<compile_context>
chip_gen: v6e
topology: v6e:2x2x1
jax: 0.10.0
libtpu: 0.0.40
codegen_flags: <defaults>
</compile_context>

<pallas_src>
import functools

import jax
import jax.numpy as jnp
from jax import lax
from jax.experimental import pallas as pl
from jax.experimental.pallas import tpu as pltpu


def _ctrnn_kernel(x_ref, win_ref, bias_ref, whh_ref, out_ref, h_scratch, *,
                  alpha, t_block):
    # grid = (batch_blocks, seq_blocks); axis 1 (seq) is the sequential one.
    @pl.when(pl.program_id(1) == 0)
    def _():
        # hidden initialized to zeros per batch block (matches init_hidden())
        h_scratch[...] = jnp.zeros_like(h_scratch)

    win = win_ref[...]                      # (i_pad, h_pad) resident W_in^T
    whh = whh_ref[...]                      # (h_pad, h_pad) resident W_hh^T
    h0 = h_scratch[...]                     # (batch_block, h_pad) carried state
    # hoist the bias broadcast out of the unrolled loop (JAX does not CSE it)
    bias_b = jnp.broadcast_to(bias_ref[...], h0.shape)

    def step(i, h):
        # fused input projection + recurrent projection for timestep i
        pre = (jnp.dot(x_ref[i], win, preferred_element_type=jnp.float32)
               + bias_b
               + jnp.dot(h, whh, preferred_element_type=jnp.float32))
        h_new = jnp.maximum(pre, 0.0)                 # relu
        h = h * (1.0 - alpha) + h_new * alpha         # leaky integration
        out_ref[i] = h.astype(out_ref.dtype)
        return h

    h = lax.fori_loop(0, t_block, step, h0, unroll=True)
    h_scratch[...] = h


def _round_up(n, m):
    return ((n + m - 1) // m) * m


def _largest_divisor(n, unit, cap):
    """Largest multiple of `unit` that divides `n` and is <= cap (>= unit)."""
    best = unit
    d = unit
    while d <= min(n, cap):
        if n % d == 0:
            best = d
        d += unit
    return best


def ctrnn_forward(x, w_in, b_in, w_hh, b_hh, *, dt=10, tau=100):
    """x: (seq_len, batch, input_size) f32.
    w_in: (hidden, input) torch-style; b_in: (hidden,)
    w_hh: (hidden, hidden);            b_hh: (hidden,)
    Returns (output (seq, batch, hidden), hidden (batch, hidden))."""
    alpha = 1.0 if dt is None else dt / tau
    seq_len, batch, input_size = x.shape
    hidden_size = w_hh.shape[0]

    x = jnp.asarray(x, jnp.float32)
    w_in = jnp.asarray(w_in, jnp.float32)
    w_hh = jnp.asarray(w_hh, jnp.float32)
    bias = jnp.asarray(b_in, jnp.float32) + jnp.asarray(b_hh, jnp.float32)

    # ---- padded extents: batch -> x8 sublanes, hidden -> x128 lanes,
    #      input -> x8 (only sublane-aligned; keeps the x read small)
    b_pad = _round_up(max(batch, 8), 8)
    h_pad = _round_up(max(hidden_size, 128), 128)
    i_pad = _round_up(max(input_size, 8), 8)

    # ---- seq tiling: prefer an exact divisor (no padded timesteps); fall back
    #      to t_block=16 with a zero-padded tail when seq_len has no divisor.
    t_block = _largest_divisor(seq_len, 1, 32)
    if t_block < 8 and seq_len > 8:
        t_block = 16
    s_pad = _round_up(seq_len, t_block)

    # ---- batch blocks: multiple of 8, <=128 rows (megacore-shardable axis)
    batch_block = _largest_divisor(b_pad, 8, 128)
    n_bblk = b_pad // batch_block
    n_tblk = s_pad // t_block

    x_p = jnp.pad(x, ((0, s_pad - seq_len), (0, b_pad - batch),
                      (0, i_pad - input_size)))
    win_t = jnp.pad(w_in.T, ((0, i_pad - input_size), (0, h_pad - hidden_size)))
    whh_t = jnp.pad(w_hh.T, ((0, h_pad - hidden_size),
                             (0, h_pad - hidden_size)))
    bias_p = jnp.pad(bias, (0, h_pad - hidden_size)).reshape(1, h_pad)

    kernel = functools.partial(_ctrnn_kernel, alpha=alpha, t_block=t_block)

    # VMEM budget: double-buffered x/out blocks + resident weights/bias +
    # hidden-state scratch; clamp to [16, 60] MiB (safe on v7x's 64 MiB VMEM).
    need_bytes = 4 * (2 * t_block * batch_block * i_pad      # x block  (x2 buf)
                      + 2 * t_block * batch_block * h_pad    # out block(x2 buf)
                      + 2 * i_pad * h_pad                    # W_in^T
                      + 2 * h_pad * h_pad                    # W_hh^T
                      + 2 * h_pad                            # bias
                      + batch_block * h_pad)                 # h scratch
    vmem_limit = int(min(60 * 2**20, max(16 * 2**20, 2 * need_bytes)))

    out = pl.pallas_call(
        kernel,
        out_shape=jax.ShapeDtypeStruct((s_pad, b_pad, h_pad), jnp.float32),
        grid_spec=pltpu.PrefetchScalarGridSpec(
            num_scalar_prefetch=0,
            grid=(n_bblk, n_tblk),
            in_specs=[
                # t_block raw-input timesteps per grid step
                pl.BlockSpec((t_block, batch_block, i_pad),
                             lambda bb, tt: (tt, bb, 0)),
                # weights / bias: full arrays, constant index -> VMEM-resident
                pl.BlockSpec((i_pad, h_pad), lambda bb, tt: (0, 0)),
                pl.BlockSpec((1, h_pad), lambda bb, tt: (0, 0)),
                pl.BlockSpec((h_pad, h_pad), lambda bb, tt: (0, 0)),
            ],
            out_specs=pl.BlockSpec((t_block, batch_block, h_pad),
                                   lambda bb, tt: (tt, bb, 0)),
            scratch_shapes=[pltpu.VMEM((batch_block, h_pad), jnp.float32)],
        ),
        compiler_params=pltpu.CompilerParams(
            dimension_semantics=("parallel", "arbitrary"),
            vmem_limit_bytes=vmem_limit),
    )(x_p, win_t, bias_p, whh_t)

    output = out[:seq_len, :batch, :hidden_size]
    # in the original module the returned hidden *is* output[-1]
    h_final = out[seq_len - 1, :batch, :hidden_size]
    return output, h_final


def _ctrnn_reference(x, w_in, b_in, w_hh, b_hh, *, dt=10, tau=100):
    """Pure-JAX reference mirroring the PyTorch forward."""
    alpha = 1.0 if dt is None else dt / tau
    h = jnp.zeros((x.shape[1], w_hh.shape[0]), jnp.float32)

    def step(h, x_t):
        h_new = jax.nn.relu(x_t @ w_in.T + b_in + h @ w_hh.T + b_hh)
        h = h * (1.0 - alpha) + h_new * alpha
        return h, h

    h_final, outs = lax.scan(step, h, x)
    return outs, h_final


if __name__ == "__main__":
    key = jax.random.PRNGKey(0)
    seq_len, batch, input_size, hidden_size = 8, 2, 4, 32

    k_x, k_wi, k_bi, k_wh, k_bh = jax.random.split(key, 5)
    x = jax.random.normal(k_x, (seq_len, batch, input_size), jnp.float32)

    # deterministic parameter init (PyTorch Linear-style uniform bounds)
    bound_in = 1.0 / (input_size ** 0.5)
    bound_hh = 1.0 / (hidden_size ** 0.5)
    w_in = jax.random.uniform(k_wi, (hidden_size, input_size), jnp.float32,
                              -bound_in, bound_in)
    b_in = jax.random.uniform(k_bi, (hidden_size,), jnp.float32,
                              -bound_in, bound_in)
    w_hh = jax.random.uniform(k_wh, (hidden_size, hidden_size), jnp.float32,
                              -bound_hh, bound_hh)
    b_hh = jax.random.uniform(k_bh, (hidden_size,), jnp.float32,
                              -bound_hh, bound_hh)

    out, h_final = ctrnn_forward(x, w_in, b_in, w_hh, b_hh, dt=10)
    out = jax.block_until_ready(out)
    h_final = jax.block_until_ready(h_final)

    out_ref, h_ref = _ctrnn_reference(x, w_in, b_in, w_hh, b_hh, dt=10)
    assert out.shape == (seq_len, batch, hidden_size)
    assert h_final.shape == (batch, hidden_size)
    assert jnp.allclose(out, out_ref, atol=1e-5, rtol=1e-5)
    assert jnp.allclose(h_final, h_ref, atol=1e-5, rtol=1e-5)

    print("KERNEL_OK")
</pallas_src>

<mosaic_0001>
module attributes {stable_mosaic.version = 11 : i64} {
  func.func @_ctrnn_kernel(%arg0: i32, %arg1: i32, %arg2: memref<8x8x8xf32, #tpu.memory_space<vmem>>, %arg3: memref<8x128xf32, #tpu.memory_space<vmem>>, %arg4: memref<1x128xf32, #tpu.memory_space<vmem>>, %arg5: memref<128x128xf32, #tpu.memory_space<vmem>>, %arg6: memref<8x8x128xf32, #tpu.memory_space<vmem>>, %arg7: memref<8x128xf32, #tpu.memory_space<vmem>>) attributes {dimension_semantics = [#tpu.dimension_semantics<parallel>, #tpu.dimension_semantics<arbitrary>], iteration_bounds = array<i64: 1, 1>, scalar_prefetch = 0 : i64, scratch_operands = 1 : i64, tpu.core_type = #tpu.core_type<tc>, window_params = [{transform_indices = @transform_0, window_bounds = array<i64: 8, 8, 8>}, {pipeline_mode = #tpu.pipeline_mode<synchronous>, transform_indices = @transform_1, window_bounds = array<i64: 8, 128>}, {pipeline_mode = #tpu.pipeline_mode<synchronous>, transform_indices = @transform_2, window_bounds = array<i64: 1, 128>}, {pipeline_mode = #tpu.pipeline_mode<synchronous>, transform_indices = @transform_3, window_bounds = array<i64: 128, 128>}, {transform_indices = @transform_4, window_bounds = array<i64: 8, 8, 128>}]} {
    %c0_i32 = arith.constant 0 : i32
    %0 = arith.cmpi eq, %arg1, %c0_i32 : i32
    %1 = arith.extui %0 : i1 to i32
    %c0_i32_0 = arith.constant 0 : i32
    %2 = arith.cmpi ne, %1, %c0_i32_0 : i32
    scf.if %2 {
      %cst_82 = arith.constant 0.000000e+00 : f32
      %154 = vector.broadcast %cst_82 : f32 to vector<8x128xf32>
      %c0_83 = arith.constant 0 : index
      %c0_84 = arith.constant 0 : index
      %155 = vector.load %arg7[%c0_83, %c0_84] : memref<8x128xf32, #tpu.memory_space<vmem>>, vector<8x128xf32>
      tpu.vector_store %arg7[%c0_83, %c0_84], %154 {strides = array<i32>} : memref<8x128xf32, #tpu.memory_space<vmem>>, vector<8x128xf32>,
    } else {
    }
    %c0 = arith.constant 0 : index
    %c0_1 = arith.constant 0 : index
    %3 = vector.load %arg3[%c0, %c0_1] : memref<8x128xf32, #tpu.memory_space<vmem>>, vector<8x128xf32>
    %c0_2 = arith.constant 0 : index
    %c0_3 = arith.constant 0 : index
    %4 = vector.load %arg5[%c0_2, %c0_3] : memref<128x128xf32, #tpu.memory_space<vmem>>, vector<128x128xf32>
    %c0_4 = arith.constant 0 : index
    %c0_5 = arith.constant 0 : index
    %5 = vector.load %arg7[%c0_4, %c0_5] : memref<8x128xf32, #tpu.memory_space<vmem>>, vector<8x128xf32>
    %c0_6 = arith.constant 0 : index
    %c0_7 = arith.constant 0 : index
    %6 = vector.load %arg4[%c0_6, %c0_7] : memref<1x128xf32, #tpu.memory_space<vmem>>, vector<1x128xf32>
    %7 = vector.shape_cast %6 : vector<1x128xf32> to vector<1x128xf32>
    %8 = vector.broadcast %7 : vector<1x128xf32> to vector<8x128xf32>
    %c0_i32_8 = arith.constant 0 : i32
    %9 = arith.index_cast %c0_i32_8 : i32 to index
    %c0_9 = arith.constant 0 : index
    %c0_10 = arith.constant 0 : index
    %10 = vector.load %arg2[%9, %c0_9, %c0_10] : memref<8x8x8xf32, #tpu.memory_space<vmem>>, vector<1x8x8xf32>
    %11 = vector.shape_cast %10 : vector<1x8x8xf32> to vector<8x8xf32>
    %cst = arith.constant dense<0.000000e+00> : vector<8x128xf32>
    %12 = tpu.matmul %11, %3, %cst {dimension_numbers = #tpu.dot_dimension_numbers<[1], [0], [0], [1], [0, 0, 1, 1], [], []>} : vector<8x8xf32>, vector<8x128xf32>, vector<8x128xf32> -> vector<8x128xf32>
    %13 = arith.addf %12, %8 : vector<8x128xf32>
    %cst_11 = arith.constant dense<0.000000e+00> : vector<8x128xf32>
    %14 = tpu.matmul %5, %4, %cst_11 {dimension_numbers = #tpu.dot_dimension_numbers<[1], [0], [0], [1], [0, 0, 1, 1], [], []>} : vector<8x128xf32>, vector<128x128xf32>, vector<8x128xf32> -> vector<8x128xf32>
    %15 = arith.addf %13, %14 : vector<8x128xf32>
    %cst_12 = arith.constant 0.000000e+00 : f32
    %16 = vector.broadcast %cst_12 : f32 to vector<8x128xf32>
    %17 = arith.maximumf %15, %16 : vector<8x128xf32>
    %cst_13 = arith.constant 0.899999976 : f32
    %18 = vector.broadcast %cst_13 : f32 to vector<8x128xf32>
    %19 = arith.mulf %5, %18 : vector<8x128xf32>
    %cst_14 = arith.constant 1.000000e-01 : f32
    %20 = vector.broadcast %cst_14 : f32 to vector<8x128xf32>
    %21 = arith.mulf %17, %20 : vector<8x128xf32>
    %22 = arith.addf %19, %21 : vector<8x128xf32>
    %23 = arith.index_cast %c0_i32_8 : i32 to index
    %c0_15 = arith.constant 0 : index
    %c0_16 = arith.constant 0 : index
    %24 = vector.load %arg6[%23, %c0_15, %c0_16] : memref<8x8x128xf32, #tpu.memory_space<vmem>>, vector<1x8x128xf32>
    %25 = vector.shape_cast %24 : vector<1x8x128xf32> to vector<8x128xf32>
    %26 = vector.shape_cast %22 : vector<8x128xf32> to vector<1x8x128xf32>
    tpu.vector_store %arg6[%23, %c0_15, %c0_16], %26 {strides = array<i32>} : memref<8x8x128xf32, #tpu.memory_space<vmem>>, vector<1x8x128xf32>,
    %c1_i32 = arith.constant 1 : i32
    %27 = arith.index_cast %c1_i32 : i32 to index
    %c0_17 = arith.constant 0 : index
    %c0_18 = arith.constant 0 : index
    %28 = vector.load %arg2[%27, %c0_17, %c0_18] : memref<8x8x8xf32, #tpu.memory_space<vmem>>, vector<1x8x8xf32>
    %29 = vector.shape_cast %28 : vector<1x8x8xf32> to vector<8x8xf32>
    %cst_19 = arith.constant dense<0.000000e+00> : vector<8x128xf32>
    %30 = tpu.matmul %29, %3, %cst_19 {dimension_numbers = #tpu.dot_dimension_numbers<[1], [0], [0], [1], [0, 0, 1, 1], [], []>} : vector<8x8xf32>, vector<8x128xf32>, vector<8x128xf32> -> vector<8x128xf32>
    %31 = arith.addf %30, %8 : vector<8x128xf32>
    %cst_20 = arith.constant dense<0.000000e+00> : vector<8x128xf32>
    %32 = tpu.matmul %22, %4, %cst_20 {dimension_numbers = #tpu.dot_dimension_numbers<[1], [0], [0], [1], [0, 0, 1, 1], [], []>} : vector<8x128xf32>, vector<128x128xf32>, vector<8x128xf32> -> vector<8x128xf32>
    %33 = arith.addf %31, %32 : vector<8x128xf32>
    %cst_21 = arith.constant 0.000000e+00 : f32
    %34 = vector.broadcast %cst_21 : f32 to vector<8x128xf32>
    %35 = arith.maximumf %33, %34 : vector<8x128xf32>
    %cst_22 = arith.constant 0.899999976 : f32
    %36 = vector.broadcast %cst_22 : f32 to vector<8x128xf32>
    %37 = arith.mulf %22, %36 : vector<8x128xf32>
    %cst_23 = arith.constant 1.000000e-01 : f32
    %38 = vector.broadcast %cst_23 : f32 to vector<8x128xf32>
    %39 = arith.mulf %35, %38 : vector<8x128xf32>
    %40 = arith.addf %37, %39 : vector<8x128xf32>
    %41 = arith.index_cast %c1_i32 : i32 to index
    %c0_24 = arith.constant 0 : index
    %c0_25 = arith.constant 0 : index
    %42 = vector.load %arg6[%41, %c0_24, %c0_25] : memref<8x8x128xf32, #tpu.memory_space<vmem>>, vector<1x8x128xf32>
    %43 = vector.shape_cast %42 : vector<1x8x128xf32> to vector<8x128xf32>
    %44 = vector.shape_cast %40 : vector<8x128xf32> to vector<1x8x128xf32>
    tpu.vector_store %arg6[%41, %c0_24, %c0_25], %44 {strides = array<i32>} : memref<8x8x128xf32, #tpu.memory_space<vmem>>, vector<1x8x128xf32>,
    %c2_i32 = arith.constant 2 : i32
    %45 = arith.index_cast %c2_i32 : i32 to index
    %c0_26 = arith.constant 0 : index
    %c0_27 = arith.constant 0 : index
    %46 = vector.load %arg2[%45, %c0_26, %c0_27] : memref<8x8x8xf32, #tpu.memory_space<vmem>>, vector<1x8x8xf32>
    %47 = vector.shape_cast %46 : vector<1x8x8xf32> to vector<8x8xf32>
    %cst_28 = arith.constant dense<0.000000e+00> : vector<8x128xf32>
    %48 = tpu.matmul %47, %3, %cst_28 {dimension_numbers = #tpu.dot_dimension_numbers<[1], [0], [0], [1], [0, 0, 1, 1], [], []>} : vector<8x8xf32>, vector<8x128xf32>, vector<8x128xf32> -> vector<8x128xf32>
    %49 = arith.addf %48, %8 : vector<8x128xf32>
    %cst_29 = arith.constant dense<0.000000e+00> : vector<8x128xf32>
    %50 = tpu.matmul %40, %4, %cst_29 {dimension_numbers = #tpu.dot_dimension_numbers<[1], [0], [0], [1], [0, 0, 1, 1], [], []>} : vector<8x128xf32>, vector<128x128xf32>, vector<8x128xf32> -> vector<8x128xf32>
    %51 = arith.addf %49, %50 : vector<8x128xf32>
    %cst_30 = arith.constant 0.000000e+00 : f32
    %52 = vector.broadcast %cst_30 : f32 to vector<8x128xf32>
    %53 = arith.maximumf %51, %52 : vector<8x128xf32>
    %cst_31 = arith.constant 0.899999976 : f32
    %54 = vector.broadcast %cst_31 : f32 to vector<8x128xf32>
    %55 = arith.mulf %40, %54 : vector<8x128xf32>
    %cst_32 = arith.constant 1.000000e-01 : f32
    %56 = vector.broadcast %cst_32 : f32 to vector<8x128xf32>
    %57 = arith.mulf %53, %56 : vector<8x128xf32>
    %58 = arith.addf %55, %57 : vector<8x128xf32>
    %59 = arith.index_cast %c2_i32 : i32 to index
    %c0_33 = arith.constant 0 : index
    %c0_34 = arith.constant 0 : index
    %60 = vector.load %arg6[%59, %c0_33, %c0_34] : memref<8x8x128xf32, #tpu.memory_space<vmem>>, vector<1x8x128xf32>
    %61 = vector.shape_cast %60 : vector<1x8x128xf32> to vector<8x128xf32>
    %62 = vector.shape_cast %58 : vector<8x128xf32> to vector<1x8x128xf32>
    tpu.vector_store %arg6[%59, %c0_33, %c0_34], %62 {strides = array<i32>} : memref<8x8x128xf32, #tpu.memory_space<vmem>>, vector<1x8x128xf32>,
    %c3_i32 = arith.constant 3 : i32
    %63 = arith.index_cast %c3_i32 : i32 to index
    %c0_35 = arith.constant 0 : index
    %c0_36 = arith.constant 0 : index
    %64 = vector.load %arg2[%63, %c0_35, %c0_36] : memref<8x8x8xf32, #tpu.memory_space<vmem>>, vector<1x8x8xf32>
    %65 = vector.shape_cast %64 : vector<1x8x8xf32> to vector<8x8xf32>
    %cst_37 = arith.constant dense<0.000000e+00> : vector<8x128xf32>
    %66 = tpu.matmul %65, %3, %cst_37 {dimension_numbers = #tpu.dot_dimension_numbers<[1], [0], [0], [1], [0, 0, 1, 1], [], []>} : vector<8x8xf32>, vector<8x128xf32>, vector<8x128xf32> -> vector<8x128xf32>
    %67 = arith.addf %66, %8 : vector<8x128xf32>
    %cst_38 = arith.constant dense<0.000000e+00> : vector<8x128xf32>
    %68 = tpu.matmul %58, %4, %cst_38 {dimension_numbers = #tpu.dot_dimension_numbers<[1], [0], [0], [1], [0, 0, 1, 1], [], []>} : vector<8x128xf32>, vector<128x128xf32>, vector<8x128xf32> -> vector<8x128xf32>
    %69 = arith.addf %67, %68 : vector<8x128xf32>
    %cst_39 = arith.constant 0.000000e+00 : f32
    %70 = vector.broadcast %cst_39 : f32 to vector<8x128xf32>
    %71 = arith.maximumf %69, %70 : vector<8x128xf32>
    %cst_40 = arith.constant 0.899999976 : f32
    %72 = vector.broadcast %cst_40 : f32 to vector<8x128xf32>
    %73 = arith.mulf %58, %72 : vector<8x128xf32>
    %cst_41 = arith.constant 1.000000e-01 : f32
    %74 = vector.broadcast %cst_41 : f32 to vector<8x128xf32>
    %75 = arith.mulf %71, %74 : vector<8x128xf32>
    %76 = arith.addf %73, %75 : vector<8x128xf32>
    %77 = arith.index_cast %c3_i32 : i32 to index
    %c0_42 = arith.constant 0 : index
    %c0_43 = arith.constant 0 : index
    %78 = vector.load %arg6[%77, %c0_42, %c0_43] : memref<8x8x128xf32, #tpu.memory_space<vmem>>, vector<1x8x128xf32>
    %79 = vector.shape_cast %78 : vector<1x8x128xf32> to vector<8x128xf32>
    %80 = vector.shape_cast %76 : vector<8x128xf32> to vector<1x8x128xf32>
    tpu.vector_store %arg6[%77, %c0_42, %c0_43], %80 {strides = array<i32>} : memref<8x8x128xf32, #tpu.memory_space<vmem>>, vector<1x8x128xf32>,
    %c4_i32 = arith.constant 4 : i32
    %81 = arith.index_cast %c4_i32 : i32 to index
    %c0_44 = arith.constant 0 : index
    %c0_45 = arith.constant 0 : index
    %82 = vector.load %arg2[%81, %c0_44, %c0_45] : memref<8x8x8xf32, #tpu.memory_space<vmem>>, vector<1x8x8xf32>
    %83 = vector.shape_cast %82 : vector<1x8x8xf32> to vector<8x8xf32>
    %cst_46 = arith.constant dense<0.000000e+00> : vector<8x128xf32>
    %84 = tpu.matmul %83, %3, %cst_46 {dimension_numbers = #tpu.dot_dimension_numbers<[1], [0], [0], [1], [0, 0, 1, 1], [], []>} : vector<8x8xf32>, vector<8x128xf32>, vector<8x128xf32> -> vector<8x128xf32>
    %85 = arith.addf %84, %8 : vector<8x128xf32>
    %cst_47 = arith.constant dense<0.000000e+00> : vector<8x128xf32>
    %86 = tpu.matmul %76, %4, %cst_47 {dimension_numbers = #tpu.dot_dimension_numbers<[1], [0], [0], [1], [0, 0, 1, 1], [], []>} : vector<8x128xf32>, vector<128x128xf32>, vector<8x128xf32> -> vector<8x128xf32>
    %87 = arith.addf %85, %86 : vector<8x128xf32>
    %cst_48 = arith.constant 0.000000e+00 : f32
    %88 = vector.broadcast %cst_48 : f32 to vector<8x128xf32>
    %89 = arith.maximumf %87, %88 : vector<8x128xf32>
    %cst_49 = arith.constant 0.899999976 : f32
    %90 = vector.broadcast %cst_49 : f32 to vector<8x128xf32>
    %91 = arith.mulf %76, %90 : vector<8x128xf32>
    %cst_50 = arith.constant 1.000000e-01 : f32
    %92 = vector.broadcast %cst_50 : f32 to vector<8x128xf32>
    %93 = arith.mulf %89, %92 : vector<8x128xf32>
    %94 = arith.addf %91, %93 : vector<8x128xf32>
    %95 = arith.index_cast %c4_i32 : i32 to index
    %c0_51 = arith.constant 0 : index
    %c0_52 = arith.constant 0 : index
    %96 = vector.load %arg6[%95, %c0_51, %c0_52] : memref<8x8x128xf32, #tpu.memory_space<vmem>>, vector<1x8x128xf32>
    %97 = vector.shape_cast %96 : vector<1x8x128xf32> to vector<8x128xf32>
    %98 = vector.shape_cast %94 : vector<8x128xf32> to vector<1x8x128xf32>
    tpu.vector_store %arg6[%95, %c0_51, %c0_52], %98 {strides = array<i32>} : memref<8x8x128xf32, #tpu.memory_space<vmem>>, vector<1x8x128xf32>,
    %c5_i32 = arith.constant 5 : i32
    %99 = arith.index_cast %c5_i32 : i32 to index
    %c0_53 = arith.constant 0 : index
    %c0_54 = arith.constant 0 : index
    %100 = vector.load %arg2[%99, %c0_53, %c0_54] : memref<8x8x8xf32, #tpu.memory_space<vmem>>, vector<1x8x8xf32>
    %101 = vector.shape_cast %100 : vector<1x8x8xf32> to vector<8x8xf32>
    %cst_55 = arith.constant dense<0.000000e+00> : vector<8x128xf32>
    %102 = tpu.matmul %101, %3, %cst_55 {dimension_numbers = #tpu.dot_dimension_numbers<[1], [0], [0], [1], [0, 0, 1, 1], [], []>} : vector<8x8xf32>, vector<8x128xf32>, vector<8x128xf32> -> vector<8x128xf32>
    %103 = arith.addf %102, %8 : vector<8x128xf32>
    %cst_56 = arith.constant dense<0.000000e+00> : vector<8x128xf32>
    %104 = tpu.matmul %94, %4, %cst_56 {dimension_numbers = #tpu.dot_dimension_numbers<[1], [0], [0], [1], [0, 0, 1, 1], [], []>} : vector<8x128xf32>, vector<128x128xf32>, vector<8x128xf32> -> vector<8x128xf32>
    %105 = arith.addf %103, %104 : vector<8x128xf32>
    %cst_57 = arith.constant 0.000000e+00 : f32
    %106 = vector.broadcast %cst_57 : f32 to vector<8x128xf32>
    %107 = arith.maximumf %105, %106 : vector<8x128xf32>
    %cst_58 = arith.constant 0.899999976 : f32
    %108 = vector.broadcast %cst_58 : f32 to vector<8x128xf32>
    %109 = arith.mulf %94, %108 : vector<8x128xf32>
    %cst_59 = arith.constant 1.000000e-01 : f32
    %110 = vector.broadcast %cst_59 : f32 to vector<8x128xf32>
    %111 = arith.mulf %107, %110 : vector<8x128xf32>
    %112 = arith.addf %109, %111 : vector<8x128xf32>
    %113 = arith.index_cast %c5_i32 : i32 to index
    %c0_60 = arith.constant 0 : index
    %c0_61 = arith.constant 0 : index
    %114 = vector.load %arg6[%113, %c0_60, %c0_61] : memref<8x8x128xf32, #tpu.memory_space<vmem>>, vector<1x8x128xf32>
    %115 = vector.shape_cast %114 : vector<1x8x128xf32> to vector<8x128xf32>
    %116 = vector.shape_cast %112 : vector<8x128xf32> to vector<1x8x128xf32>
    tpu.vector_store %arg6[%113, %c0_60, %c0_61], %116 {strides = array<i32>} : memref<8x8x128xf32, #tpu.memory_space<vmem>>, vector<1x8x128xf32>,
    %c6_i32 = arith.constant 6 : i32
    %117 = arith.index_cast %c6_i32 : i32 to index
    %c0_62 = arith.constant 0 : index
    %c0_63 = arith.constant 0 : index
    %118 = vector.load %arg2[%117, %c0_62, %c0_63] : memref<8x8x8xf32, #tpu.memory_space<vmem>>, vector<1x8x8xf32>
    %119 = vector.shape_cast %118 : vector<1x8x8xf32> to vector<8x8xf32>
    %cst_64 = arith.constant dense<0.000000e+00> : vector<8x128xf32>
    %120 = tpu.matmul %119, %3, %cst_64 {dimension_numbers = #tpu.dot_dimension_numbers<[1], [0], [0], [1], [0, 0, 1, 1], [], []>} : vector<8x8xf32>, vector<8x128xf32>, vector<8x128xf32> -> vector<8x128xf32>
    %121 = arith.addf %120, %8 : vector<8x128xf32>
    %cst_65 = arith.constant dense<0.000000e+00> : vector<8x128xf32>
    %122 = tpu.matmul %112, %4, %cst_65 {dimension_numbers = #tpu.dot_dimension_numbers<[1], [0], [0], [1], [0, 0, 1, 1], [], []>} : vector<8x128xf32>, vector<128x128xf32>, vector<8x128xf32> -> vector<8x128xf32>
    %123 = arith.addf %121, %122 : vector<8x128xf32>
    %cst_66 = arith.constant 0.000000e+00 : f32
    %124 = vector.broadcast %cst_66 : f32 to vector<8x128xf32>
    %125 = arith.maximumf %123, %124 : vector<8x128xf32>
    %cst_67 = arith.constant 0.899999976 : f32
    %126 = vector.broadcast %cst_67 : f32 to vector<8x128xf32>
    %127 = arith.mulf %112, %126 : vector<8x128xf32>
    %cst_68 = arith.constant 1.000000e-01 : f32
    %128 = vector.broadcast %cst_68 : f32 to vector<8x128xf32>
    %129 = arith.mulf %125, %128 : vector<8x128xf32>
    %130 = arith.addf %127, %129 : vector<8x128xf32>
    %131 = arith.index_cast %c6_i32 : i32 to index
    %c0_69 = arith.constant 0 : index
    %c0_70 = arith.constant 0 : index
    %132 = vector.load %arg6[%131, %c0_69, %c0_70] : memref<8x8x128xf32, #tpu.memory_space<vmem>>, vector<1x8x128xf32>
    %133 = vector.shape_cast %132 : vector<1x8x128xf32> to vector<8x128xf32>
    %134 = vector.shape_cast %130 : vector<8x128xf32> to vector<1x8x128xf32>
    tpu.vector_store %arg6[%131, %c0_69, %c0_70], %134 {strides = array<i32>} : memref<8x8x128xf32, #tpu.memory_space<vmem>>, vector<1x8x128xf32>,
    %c7_i32 = arith.constant 7 : i32
    %135 = arith.index_cast %c7_i32 : i32 to index
    %c0_71 = arith.constant 0 : index
    %c0_72 = arith.constant 0 : index
    %136 = vector.load %arg2[%135, %c0_71, %c0_72] : memref<8x8x8xf32, #tpu.memory_space<vmem>>, vector<1x8x8xf32>
    %137 = vector.shape_cast %136 : vector<1x8x8xf32> to vector<8x8xf32>
    %cst_73 = arith.constant dense<0.000000e+00> : vector<8x128xf32>
    %138 = tpu.matmul %137, %3, %cst_73 {dimension_numbers = #tpu.dot_dimension_numbers<[1], [0], [0], [1], [0, 0, 1, 1], [], []>} : vector<8x8xf32>, vector<8x128xf32>, vector<8x128xf32> -> vector<8x128xf32>
    %139 = arith.addf %138, %8 : vector<8x128xf32>
    %cst_74 = arith.constant dense<0.000000e+00> : vector<8x128xf32>
    %140 = tpu.matmul %130, %4, %cst_74 {dimension_numbers = #tpu.dot_dimension_numbers<[1], [0], [0], [1], [0, 0, 1, 1], [], []>} : vector<8x128xf32>, vector<128x128xf32>, vector<8x128xf32> -> vector<8x128xf32>
    %141 = arith.addf %139, %140 : vector<8x128xf32>
    %cst_75 = arith.constant 0.000000e+00 : f32
    %142 = vector.broadcast %cst_75 : f32 to vector<8x128xf32>
    %143 = arith.maximumf %141, %142 : vector<8x128xf32>
    %cst_76 = arith.constant 0.899999976 : f32
    %144 = vector.broadcast %cst_76 : f32 to vector<8x128xf32>
    %145 = arith.mulf %130, %144 : vector<8x128xf32>
    %cst_77 = arith.constant 1.000000e-01 : f32
    %146 = vector.broadcast %cst_77 : f32 to vector<8x128xf32>
    %147 = arith.mulf %143, %146 : vector<8x128xf32>
    %148 = arith.addf %145, %147 : vector<8x128xf32>
    %149 = arith.index_cast %c7_i32 : i32 to index
    %c0_78 = arith.constant 0 : index
    %c0_79 = arith.constant 0 : index
    %150 = vector.load %arg6[%149, %c0_78, %c0_79] : memref<8x8x128xf32, #tpu.memory_space<vmem>>, vector<1x8x128xf32>
    %151 = vector.shape_cast %150 : vector<1x8x128xf32> to vector<8x128xf32>
    %152 = vector.shape_cast %148 : vector<8x128xf32> to vector<1x8x128xf32>
    tpu.vector_store %arg6[%149, %c0_78, %c0_79], %152 {strides = array<i32>} : memref<8x8x128xf32, #tpu.memory_space<vmem>>, vector<1x8x128xf32>,
    %c8_i32 = arith.constant 8 : i32
    %c0_80 = arith.constant 0 : index
    %c0_81 = arith.constant 0 : index
    %153 = vector.load %arg7[%c0_80, %c0_81] : memref<8x128xf32, #tpu.memory_space<vmem>>, vector<8x128xf32>
    tpu.vector_store %arg7[%c0_80, %c0_81], %148 {strides = array<i32>} : memref<8x128xf32, #tpu.memory_space<vmem>>, vector<8x128xf32>,
    return
  }
  func.func @transform_0(%arg0: i32, %arg1: i32) -> (i32, i32, i32) {
    %c0_i32 = arith.constant 0 : i32
    %c0_i32_0 = arith.constant 0 : i32
    return %arg1, %arg0, %c0_i32 : i32, i32, i32
  }
  func.func @transform_1(%arg0: i32, %arg1: i32) -> (i32, i32) {
    %c0_i32 = arith.constant 0 : i32
    %c0_i32_0 = arith.constant 0 : i32
    %c0_i32_1 = arith.constant 0 : i32
    return %c0_i32, %c0_i32_0 : i32, i32
  }
  func.func @transform_2(%arg0: i32, %arg1: i32) -> (i32, i32) {
    %c0_i32 = arith.constant 0 : i32
    %c0_i32_0 = arith.constant 0 : i32
    %c0_i32_1 = arith.constant 0 : i32
    return %c0_i32, %c0_i32_0 : i32, i32
  }
  func.func @transform_3(%arg0: i32, %arg1: i32) -> (i32, i32) {
    %c0_i32 = arith.constant 0 : i32
    %c0_i32_0 = arith.constant 0 : i32
    %c0_i32_1 = arith.constant 0 : i32
    return %c0_i32, %c0_i32_0 : i32, i32
  }
  func.func @transform_4(%arg0: i32, %arg1: i32) -> (i32, i32, i32) {
    %c0_i32 = arith.constant 0 : i32
    %c0_i32_0 = arith.constant 0 : i32
    return %arg1, %arg0, %c0_i32 : i32, i32, i32
  }
}

</mosaic_0001>

<llo_original>
// kernel: tpu_custom_call.1
$region0: #{tpu_custom_call.1}
  #allocation0 [shape = 'u32[]', space=smem, size = 0x4, offset = 0x4, fixed_abs, tag = 'smem constant byte address 0x4 - core index']
  #allocation1 [shape = 'u32[144,128]{1,0:T(1,128)}', space=vmem, size = 0x12000, scoped, tag = 'internal scratch']
  #allocation2 [shape = 'f32[8,128]{1,0:T(8,128)}', space=vmem, size = 0x1000, scoped, tag = 'scratch operand']
  %s0 = inlined_call_operand.hbm [shape: f32[8,8,8], index: 0, kind: input, shape index: {}]
  %s1 = inlined_call_operand.hbm [shape: f32[8,128], index: 1, kind: input, shape index: {}]
  %s2 = inlined_call_operand.vmem [shape: f32[1,128], index: 2, kind: input, shape index: {}]
  %s3 = inlined_call_operand.hbm [shape: f32[128,128], index: 3, kind: input, shape index: {}]
  %s4 = inlined_call_operand.hbm [shape: f32[8,8,128], index: 4, kind: output, shape index: {}]
  %s5 = sld [smem:[#allocation0]]
  $region42: #{tpu_custom_call.1} parent=0
    _
  %s7 = ssub.s32 1, %s5
  %s8 = scalar_select 0, %s7, %s5
  $region1: #{tpu_custom_call.1} parent=0
    #allocation3 [shape = 'u8[32768]{0}', space=vmem, size = 0x8000, scoped, tag = 'input window, operand 0, single buffered']
    #allocation4 [shape = 's32[1]{0}', space=sflag, size = 0x4, scoped, tag = 'scoped memory for tpu_custom_call.1']
    #allocation5 [shape = 's32[1]{0}', space=sflag, size = 0x4, scoped, tag = 'scoped memory for tpu_custom_call.1']
    #allocation6 [shape = 'u8[4096]{0}', space=vmem, size = 0x1000, scoped, tag = 'input window, operand 1, single buffered']
    #allocation7 [shape = 's32[1]{0}', space=sflag, size = 0x4, scoped, tag = 'scoped memory for tpu_custom_call.1']
    #allocation8 [shape = 'u8[65536]{0}', space=vmem, size = 0x10000, scoped, tag = 'input window, operand 3, single buffered']
    #allocation9 [shape = 'u8[32768]{0}', space=vmem, size = 0x8000, scoped, tag = 'output window, operand 0, single buffered']
    %9 = vsyncpa [#allocation4], 0
    %10 = vsyncpa [#allocation7], 0
    %11 = vsyncpa [#allocation5], 0
    // Predicated region
    $region2: #{tpu_custom_call.1} parent=1 // pred_check
      _
    $region3: #{tpu_custom_call.1} parent=1 // pred_check_branch
      %13 = sbr.rel (0) target = $region5
    $region4: #{tpu_custom_call.1} parent=1 // pred_region
      %s15 = ssub.s32 1024, 1024
      %16 = vsyncadd [#allocation4], %s15
      %s17 = sshll.u32 [#allocation3], 4
      %s18 = int_to_ptr.vmem [resolvable:$true] %s17
      %23 = dma.hbm_to_vmem [thread:$0]  %s0, 1024, %s18, [#allocation4], 128, 128, 8
    $region5: #{tpu_custom_call.1} parent=1 // pred_fallthru
      _
    // Predicated region
    $region6: #{tpu_custom_call.1} parent=1 // pred_check
      _
    $region7: #{tpu_custom_call.1} parent=1 // pred_check_branch
      %25 = sbr.rel (0) target = $region9
    $region8: #{tpu_custom_call.1} parent=1 // pred_region
      %s27 = ssub.s32 128, 128
      %28 = vsyncadd [#allocation7], %s27
      %s30 = sshll.u32 [#allocation6], 4
      %s31 = int_to_ptr.vmem [resolvable:$true] %s30
      %33 = dma.hbm_to_vmem [thread:$0]  %s1, 128, %s31, [#allocation7]
    $region9: #{tpu_custom_call.1} parent=1 // pred_fallthru
      _
    // Predicated region
    $region10: #{tpu_custom_call.1} parent=1 // pred_check
      _
    $region11: #{tpu_custom_call.1} parent=1 // pred_check_branch
      %35 = sbr.rel (0) target = $region13
    $region12: #{tpu_custom_call.1} parent=1 // pred_region
      _
    $region13: #{tpu_custom_call.1} parent=1 // pred_fallthru
      _
    // Predicated region
    $region14: #{tpu_custom_call.1} parent=1 // pred_check
      _
    $region15: #{tpu_custom_call.1} parent=1 // pred_check_branch
      %37 = sbr.rel (0) target = $region17
    $region16: #{tpu_custom_call.1} parent=1 // pred_region
      %s39 = ssub.s32 2048, 2048
      %40 = vsyncadd [#allocation7], %s39
      %s41 = sshll.u32 [#allocation8], 4
      %s42 = int_to_ptr.vmem [resolvable:$true] %s41
      %47 = dma.hbm_to_vmem [thread:$0]  %s3, 2048, %s42, [#allocation7], 128, 128, 8
    $region17: #{tpu_custom_call.1} parent=1 // pred_fallthru
      _
    // Predicated region
    $region18: #{tpu_custom_call.1} parent=1 // pred_check
      _
    $region19: #{tpu_custom_call.1} parent=1 // pred_check_branch
      %49 = sbr.rel (0) target = $region21
    $region20: #{tpu_custom_call.1} parent=1 // pred_region
      %50 = dma.done [#allocation4], 1024
    $region21: #{tpu_custom_call.1} parent=1 // pred_fallthru
      _
    // Predicated region
    $region22: #{tpu_custom_call.1} parent=1 // pred_check
      _
    $region23: #{tpu_custom_call.1} parent=1 // pred_check_branch
      %52 = sbr.rel (0) target = $region25
    $region24: #{tpu_custom_call.1} parent=1 // pred_region
      %53 = dma.done [#allocation7], 128
    $region25: #{tpu_custom_call.1} parent=1 // pred_fallthru
      _
    // Predicated region
    $region26: #{tpu_custom_call.1} parent=1 // pred_check
      _
    $region27: #{tpu_custom_call.1} parent=1 // pred_check_branch
      %55 = sbr.rel (0) target = $region29
    $region28: #{tpu_custom_call.1} parent=1 // pred_region
      %56 = dma.done [#allocation7], 2048
    $region29: #{tpu_custom_call.1} parent=1 // pred_fallthru
      _
    %p57 = scmp.eq.s32.totalorder 0, 0
    // Predicated region
    $region30: #{tpu_custom_call.1} parent=1 // pred_check
      %p58 = pneg %p57
    $region31: #{tpu_custom_call.1} parent=1 // pred_check_branch
      %60 = sbr.rel (%p58) target = $region33
    $region32: #{tpu_custom_call.1} parent=1 // pred_region
      %61 = vst [vmem:[#allocation2] sm:$0xff] 0.0
    $region33: #{tpu_custom_call.1} parent=1 // pred_fallthru
      _
    %v62 = vld [vmem:[#allocation6] sm:$0xff]
    %v63 = vld [vmem:[#allocation8] sm:$0xff]
    %v64 = vld [vmem:[#allocation8 + $0x8] sm:$0xff]
    %v65 = vld [vmem:[#allocation8 + $0x10] sm:$0xff]
    %v66 = vld [vmem:[#allocation8 + $0x18] sm:$0xff]
    %v67 = vld [vmem:[#allocation8 + $0x20] sm:$0xff]
    %v68 = vld [vmem:[#allocation8 + $0x28] sm:$0xff]
    %v69 = vld [vmem:[#allocation8 + $0x30] sm:$0xff]
    %v70 = vld [vmem:[#allocation8 + $0x38] sm:$0xff]
    %v71 = vld [vmem:[#allocation8 + $0x40] sm:$0xff]
    %v72 = vld [vmem:[#allocation8 + $0x48] sm:$0xff]
    %v73 = vld [vmem:[#allocation8 + $0x50] sm:$0xff]
    %v74 = vld [vmem:[#allocation8 + $0x58] sm:$0xff]
    %v75 = vld [vmem:[#allocation8 + $0x60] sm:$0xff]
    %v76 = vld [vmem:[#allocation8 + $0x68] sm:$0xff]
    %v77 = vld [vmem:[#allocation8 + $0x70] sm:$0xff]
    %v78 = vld [vmem:[#allocation8 + $0x78] sm:$0xff]
    %v79 = vld [vmem:[#allocation2] sm:$0xff]
    %v80 = vld [vmem:[%s2] sm:$0x1]
    %v82 = vlaneseq
    %v83 = vshrl.u32 %v82, 7
    %v84 = vsub.s32 0, %v83
    %v85 = vrot.slane %v80, %v84
    %v87 = vld [vmem:[#allocation3] sm:$0xff]
    %vm88 = vcmask 64512
    %v90 = vsel %vm88, %v87, 0
    %92 = vmatprep.subr.mxu0 0.0
    %93 = vmatpush1.msra.mxu0 0.0
    %94 = vmatprep.subr.mxu0 0.0
    %95 = vmatpush1.msra.mxu0 0.0
    %96 = vmatprep.subr.mxu0 0.0
    %97 = vmatpush1.msra.mxu0 0.0
    %98 = vmatprep.subr.mxu0 0.0
    %99 = vmatpush1.msra.mxu0 0.0
    %100 = vmatprep.subr.mxu0 0.0
    %101 = vmatpush1.msra.mxu0 0.0
    %102 = vmatprep.subr.mxu0 0.0
    %103 = vmatpush1.msra.mxu0 0.0
    %104 = vmatprep.subr.mxu0 0.0
    %105 = vmatpush1.msra.mxu0 0.0
    %106 = vmatprep.subr.mxu0 0.0
    %107 = vmatpush1.msra.mxu0 0.0
    %108 = vmatprep.subr.mxu0 0.0
    %109 = vmatpush1.msra.mxu0 0.0
    %110 = vmatprep.subr.mxu0 0.0
    %111 = vmatpush1.msra.mxu0 0.0
    %112 = vmatprep.subr.mxu0 0.0
    %113 = vmatpush1.msra.mxu0 0.0
    %114 = vmatprep.subr.mxu0 0.0
    %115 = vmatpush1.msra.mxu0 0.0
    %116 = vmatprep.subr.mxu0 0.0
    %117 = vmatpush1.msra.mxu0 0.0
    %118 = vmatprep.subr.mxu0 0.0
    %119 = vmatpush1.msra.mxu0 0.0
    %120 = vmatprep.subr.mxu0 0.0
    %121 = vmatpush1.msra.mxu0 0.0
    %122 = vmatprep.subr.mxu0 0.0
    %123 = vmatpush1.msra.mxu0 %v62
    %124 = vmatprep.subr.mxu0 0.0
    %125 = vmatpush2.msra.mxu0 0.0
    %126 = vmatprep.subr.mxu0 0.0
    %127 = vmatpush2.msra.mxu0 0.0
    %128 = vmatprep.subr.mxu0 0.0
    %129 = vmatpush2.msra.mxu0 0.0
    %130 = vmatprep.subr.mxu0 0.0
    %131 = vmatpush2.msra.mxu0 0.0
    %132 = vmatprep.subr.mxu0 0.0
    %133 = vmatpush2.msra.mxu0 0.0
    %134 = vmatprep.subr.mxu0 0.0
    %135 = vmatpush2.msra.mxu0 0.0
    %136 = vmatprep.subr.mxu0 0.0
    %137 = vmatpush2.msra.mxu0 0.0
    %138 = vmatprep.subr.mxu0 0.0
    %139 = vmatpush2.msra.mxu0 0.0
    %140 = vmatprep.subr.mxu0 0.0
    %141 = vmatpush2.msra.mxu0 0.0
    %142 = vmatprep.subr.mxu0 0.0
    %143 = vmatpush2.msra.mxu0 0.0
    %144 = vmatprep.subr.mxu0 0.0
    %145 = vmatpush2.msra.mxu0 0.0
    %146 = vmatprep.subr.mxu0 0.0
    %147 = vmatpush2.msra.mxu0 0.0
    %148 = vmatprep.subr.mxu0 0.0
    %149 = vmatpush2.msra.mxu0 0.0
    %150 = vmatprep.subr.mxu0 0.0
    %151 = vmatpush2.msra.mxu0 0.0
    %152 = vmatprep.subr.mxu0 0.0
    %153 = vmatpush2.msra.mxu0 0.0
    %154 = vmatprep.subr.mxu0 0.0
    %155 = vmatpush2.msra.mxu0 0.0
    %156 = vmatprep.mubr.f32.mxu0 0.0
    %157 = vmatmul.mubr.f32.gmra.mxu0 %v90
    %v158 = vpop.f32.mrf.mxu0
    %v159 = vadd.f32 %v85, %v158
    %v160 = vpop.f32.mrf.mxu0
    %161 = vdwg.mxu0
    %162 = vmatprep.subr.mxu0 0.0
    %163 = vmatpush1.msra.mxu0 %v78
    %164 = vmatprep.subr.mxu0 0.0
    %165 = vmatpush1.msra.mxu0 %v77
    %166 = vmatprep.subr.mxu0 0.0
    %167 = vmatpush1.msra.mxu0 %v76
    %168 = vmatprep.subr.mxu0 0.0
    %169 = vmatpush1.msra.mxu0 %v75
    %170 = vmatprep.subr.mxu0 0.0
    %171 = vmatpush1.msra.mxu0 %v74
    %172 = vmatprep.subr.mxu0 0.0
    %173 = vmatpush1.msra.mxu0 %v73
    %174 = vmatprep.subr.mxu0 0.0
    %175 = vmatpush1.msra.mxu0 %v72
    %176 = vmatprep.subr.mxu0 0.0
    %177 = vmatpush1.msra.mxu0 %v71
    %178 = vmatprep.subr.mxu0 0.0
    %179 = vmatpush1.msra.mxu0 %v70
    %180 = vmatprep.subr.mxu0 0.0
    %181 = vmatpush1.msra.mxu0 %v69
    %182 = vmatprep.subr.mxu0 0.0
    %183 = vmatpush1.msra.mxu0 %v68
    %184 = vmatprep.subr.mxu0 0.0
    %185 = vmatpush1.msra.mxu0 %v67
    %186 = vmatprep.subr.mxu0 0.0
    %187 = vmatpush1.msra.mxu0 %v66
    %188 = vmatprep.subr.mxu0 0.0
    %189 = vmatpush1.msra.mxu0 %v65
    %190 = vmatprep.subr.mxu0 0.0
    %191 = vmatpush1.msra.mxu0 %v64
    %192 = vmatprep.subr.mxu0 0.0
    %193 = vmatpush1.msra.mxu0 %v63
    %194 = vmatprep.subr.mxu0 0.0
    %195 = vmatpush2.msra.mxu0 0.0
    %196 = vmatprep.subr.mxu0 0.0
    %197 = vmatpush2.msra.mxu0 0.0
    %198 = vmatprep.subr.mxu0 0.0
    %199 = vmatpush2.msra.mxu0 0.0
    %200 = vmatprep.subr.mxu0 0.0
    %201 = vmatpush2.msra.mxu0 0.0
    %202 = vmatprep.subr.mxu0 0.0
    %203 = vmatpush2.msra.mxu0 0.0
    %204 = vmatprep.subr.mxu0 0.0
    %205 = vmatpush2.msra.mxu0 0.0
    %206 = vmatprep.subr.mxu0 0.0
    %207 = vmatpush2.msra.mxu0 0.0
    %208 = vmatprep.subr.mxu0 0.0
    %209 = vmatpush2.msra.mxu0 0.0
    %210 = vmatprep.subr.mxu0 0.0
    %211 = vmatpush2.msra.mxu0 0.0
    %212 = vmatprep.subr.mxu0 0.0
    %213 = vmatpush2.msra.mxu0 0.0
    %214 = vmatprep.subr.mxu0 0.0
    %215 = vmatpush2.msra.mxu0 0.0
    %216 = vmatprep.subr.mxu0 0.0
    %217 = vmatpush2.msra.mxu0 0.0
    %218 = vmatprep.subr.mxu0 0.0
    %219 = vmatpush2.msra.mxu0 0.0
    %220 = vmatprep.subr.mxu0 0.0
    %221 = vmatpush2.msra.mxu0 0.0
    %222 = vmatprep.subr.mxu0 0.0
    %223 = vmatpush2.msra.mxu0 0.0
    %224 = vmatprep.subr.mxu0 0.0
    %225 = vmatpush2.msra.mxu0 0.0
    %226 = vmatprep.mubr.f32.mxu0 0.0
    %227 = vmatmul.mubr.f32.gmra.mxu0 %v79
    %v228 = vpop.f32.mrf.mxu0
    %v229 = vadd.f32 0.0, %v228
    %v230 = vpop.f32.mrf.mxu0
    %231 = vdwg.mxu0
    %v232 = vadd.f32 %v159, %v229
    %v233 = vmax.f32 %v232, 0.0
    %v234 = vmul.f32 %v79, 0.9
    %v235 = vmul.f32 %v233, 0.1
    %v236 = vadd.f32 %v234, %v235
    %237 = vst [vmem:[#allocation9] sm:$0xff] %v236
    %s238 = scalar_lea.vmem [#allocation3], 8
    %v239 = vld [vmem:[%s238] sm:$0xff]
    %v241 = vsel %vm88, %v239, 0
    %243 = vmatprep.subr.mxu0 0.0
    %244 = vmatpush1.msra.mxu0 0.0
    %245 = vmatprep.subr.mxu0 0.0
    %246 = vmatpush1.msra.mxu0 0.0
    %247 = vmatprep.subr.mxu0 0.0
    %248 = vmatpush1.msra.mxu0 0.0
    %249 = vmatprep.subr.mxu0 0.0
    %250 = vmatpush1.msra.mxu0 0.0
    %251 = vmatprep.subr.mxu0 0.0
    %252 = vmatpush1.msra.mxu0 0.0
    %253 = vmatprep.subr.mxu0 0.0
    %254 = vmatpush1.msra.mxu0 0.0
    %255 = vmatprep.subr.mxu0 0.0
    %256 = vmatpush1.msra.mxu0 0.0
    %257 = vmatprep.subr.mxu0 0.0
    %258 = vmatpush1.msra.mxu0 0.0
    %259 = vmatprep.subr.mxu0 0.0
    %260 = vmatpush1.msra.mxu0 0.0
    %261 = vmatprep.subr.mxu0 0.0
    %262 = vmatpush1.msra.mxu0 0.0
    %263 = vmatprep.subr.mxu0 0.0
    %264 = vmatpush1.msra.mxu0 0.0
    %265 = vmatprep.subr.mxu0 0.0
    %266 = vmatpush1.msra.mxu0 0.0
    %267 = vmatprep.subr.mxu0 0.0
    %268 = vmatpush1.msra.mxu0 0.0
    %269 = vmatprep.subr.mxu0 0.0
    %270 = vmatpush1.msra.mxu0 0.0
    %271 = vmatprep.subr.mxu0 0.0
    %272 = vmatpush1.msra.mxu0 0.0
    %273 = vmatprep.subr.mxu0 0.0
    %274 = vmatpush1.msra.mxu0 %v62
    %275 = vmatprep.subr.mxu0 0.0
    %276 = vmatpush2.msra.mxu0 0.0
    %277 = vmatprep.subr.mxu0 0.0
    %278 = vmatpush2.msra.mxu0 0.0
    %279 = vmatprep.subr.mxu0 0.0
    %280 = vmatpush2.msra.mxu0 0.0
    %281 = vmatprep.subr.mxu0 0.0
    %282 = vmatpush2.msra.mxu0 0.0
    %283 = vmatprep.subr.mxu0 0.0
    %284 = vmatpush2.msra.mxu0 0.0
    %285 = vmatprep.subr.mxu0 0.0
    %286 = vmatpush2.msra.mxu0 0.0
    %287 = vmatprep.subr.mxu0 0.0
    %288 = vmatpush2.msra.mxu0 0.0
    %289 = vmatprep.subr.mxu0 0.0
    %290 = vmatpush2.msra.mxu0 0.0
    %291 = vmatprep.subr.mxu0 0.0
    %292 = vmatpush2.msra.mxu0 0.0
    %293 = vmatprep.subr.mxu0 0.0
    %294 = vmatpush2.msra.mxu0 0.0
    %295 = vmatprep.subr.mxu0 0.0
    %296 = vmatpush2.msra.mxu0 0.0
    %297 = vmatprep.subr.mxu0 0.0
    %298 = vmatpush2.msra.mxu0 0.0
    %299 = vmatprep.subr.mxu0 0.0
    %300 = vmatpush2.msra.mxu0 0.0
    %301 = vmatprep.subr.mxu0 0.0
    %302 = vmatpush2.msra.mxu0 0.0
    %303 = vmatprep.subr.mxu0 0.0
    %304 = vmatpush2.msra.mxu0 0.0
    %305 = vmatprep.subr.mxu0 0.0
    %306 = vmatpush2.msra.mxu0 0.0
    %307 = vmatprep.mubr.f32.mxu0 0.0
    %308 = vmatmul.mubr.f32.gmra.mxu0 %v241
    %v309 = vpop.f32.mrf.mxu0
    %v310 = vadd.f32 %v85, %v309
    %v311 = vpop.f32.mrf.mxu0
    %312 = vdwg.mxu0
    %313 = vmatprep.subr.mxu0 0.0
    %314 = vmatpush1.msra.mxu0 %v78
    %315 = vmatprep.subr.mxu0 0.0
    %316 = vmatpush1.msra.mxu0 %v77
    %317 = vmatprep.subr.mxu0 0.0
    %318 = vmatpush1.msra.mxu0 %v76
    %319 = vmatprep.subr.mxu0 0.0
    %320 = vmatpush1.msra.mxu0 %v75
    %321 = vmatprep.subr.mxu0 0.0
    %322 = vmatpush1.msra.mxu0 %v74
    %323 = vmatprep.subr.mxu0 0.0
    %324 = vmatpush1.msra.mxu0 %v73
    %325 = vmatprep.subr.mxu0 0.0
    %326 = vmatpush1.msra.mxu0 %v72
    %327 = vmatprep.subr.mxu0 0.0
    %328 = vmatpush1.msra.mxu0 %v71
    %329 = vmatprep.subr.mxu0 0.0
    %330 = vmatpush1.msra.mxu0 %v70
    %331 = vmatprep.subr.mxu0 0.0
    %332 = vmatpush1.msra.mxu0 %v69
    %333 = vmatprep.subr.mxu0 0.0
    %334 = vmatpush1.msra.mxu0 %v68
    %335 = vmatprep.subr.mxu0 0.0
    %336 = vmatpush1.msra.mxu0 %v67
    %337 = vmatprep.subr.mxu0 0.0
    %338 = vmatpush1.msra.mxu0 %v66
    %339 = vmatprep.subr.mxu0 0.0
    %340 = vmatpush1.msra.mxu0 %v65
    %341 = vmatprep.subr.mxu0 0.0
    %342 = vmatpush1.msra.mxu0 %v64
    %343 = vmatprep.subr.mxu0 0.0
    %344 = vmatpush1.msra.mxu0 %v63
    %345 = vmatprep.subr.mxu0 0.0
    %346 = vmatpush2.msra.mxu0 0.0
    %347 = vmatprep.subr.mxu0 0.0
    %348 = vmatpush2.msra.mxu0 0.0
    %349 = vmatprep.subr.mxu0 0.0
    %350 = vmatpush2.msra.mxu0 0.0
    %351 = vmatprep.subr.mxu0 0.0
    %352 = vmatpush2.msra.mxu0 0.0
    %353 = vmatprep.subr.mxu0 0.0
    %354 = vmatpush2.msra.mxu0 0.0
    %355 = vmatprep.subr.mxu0 0.0
    %356 = vmatpush2.msra.mxu0 0.0
    %357 = vmatprep.subr.mxu0 0.0
    %358 = vmatpush2.msra.mxu0 0.0
    %359 = vmatprep.subr.mxu0 0.0
    %360 = vmatpush2.msra.mxu0 0.0
    %361 = vmatprep.subr.mxu0 0.0
    %362 = vmatpush2.msra.mxu0 0.0
    %363 = vmatprep.subr.mxu0 0.0
    %364 = vmatpush2.msra.mxu0 0.0
    %365 = vmatprep.subr.mxu0 0.0
    %366 = vmatpush2.msra.mxu0 0.0
    %367 = vmatprep.subr.mxu0 0.0
    %368 = vmatpush2.msra.mxu0 0.0
    %369 = vmatprep.subr.mxu0 0.0
    %370 = vmatpush2.msra.mxu0 0.0
    %371 = vmatprep.subr.mxu0 0.0
    %372 = vmatpush2.msra.mxu0 0.0
    %373 = vmatprep.subr.mxu0 0.0
    %374 = vmatpush2.msra.mxu0 0.0
    %375 = vmatprep.subr.mxu0 0.0
    %376 = vmatpush2.msra.mxu0 0.0
    %377 = vmatprep.mubr.f32.mxu0 0.0
    %378 = vmatmul.mubr.f32.gmra.mxu0 %v236
    %v379 = vpop.f32.mrf.mxu0
    %v380 = vadd.f32 0.0, %v379
    %v381 = vpop.f32.mrf.mxu0
    %382 = vdwg.mxu0
    %v383 = vadd.f32 %v310, %v380
    %v384 = vmax.f32 %v383, 0.0
    %v385 = vmul.f32 %v236, 0.9
    %v386 = vmul.f32 %v384, 0.1
    %v387 = vadd.f32 %v385, %v386
    %s388 = scalar_lea.vmem [#allocation9], 8
    %389 = vst [vmem:[%s388] sm:$0xff] %v387
    %s390 = scalar_lea.vmem [#allocation3], 16
    %v391 = vld [vmem:[%s390] sm:$0xff]
    %v393 = vsel %vm88, %v391, 0
    %395 = vmatprep.subr.mxu0 0.0
    %396 = vmatpush1.msra.mxu0 0.0
    %397 = vmatprep.subr.mxu0 0.0
    %398 = vmatpush1.msra.mxu0 0.0
    %399 = vmatprep.subr.mxu0 0.0
    %400 = vmatpush1.msra.mxu0 0.0
    %401 = vmatprep.subr.mxu0 0.0
    %402 = vmatpush1.msra.mxu0 0.0
    %403 = vmatprep.subr.mxu0 0.0
    %404 = vmatpush1.msra.mxu0 0.0
    %405 = vmatprep.subr.mxu0 0.0
    %406 = vmatpush1.msra.mxu0 0.0
    %407 = vmatprep.subr.mxu0 0.0
    %408 = vmatpush1.msra.mxu0 0.0
    %409 = vmatprep.subr.mxu0 0.0
    %410 = vmatpush1.msra.mxu0 0.0
    %411 = vmatprep.subr.mxu0 0.0
    %412 = vmatpush1.msra.mxu0 0.0
    %413 = vmatprep.subr.mxu0 0.0
    %414 = vmatpush1.msra.mxu0 0.0
    %415 = vmatprep.subr.mxu0 0.0
    %416 = vmatpush1.msra.mxu0 0.0
    %417 = vmatprep.subr.mxu0 0.0
    %418 = vmatpush1.msra.mxu0 0.0
    %419 = vmatprep.subr.mxu0 0.0
    %420 = vmatpush1.msra.mxu0 0.0
    %421 = vmatprep.subr.mxu0 0.0
    %422 = vmatpush1.msra.mxu0 0.0
    %423 = vmatprep.subr.mxu0 0.0
    %424 = vmatpush1.msra.mxu0 0.0
    %425 = vmatprep.subr.mxu0 0.0
    %426 = vmatpush1.msra.mxu0 %v62
    %427 = vmatprep.subr.mxu0 0.0
    %428 = vmatpush2.msra.mxu0 0.0
    %429 = vmatprep.subr.mxu0 0.0
    %430 = vmatpush2.msra.mxu0 0.0
    %431 = vmatprep.subr.mxu0 0.0
    %432 = vmatpush2.msra.mxu0 0.0
    %433 = vmatprep.subr.mxu0 0.0
    %434 = vmatpush2.msra.mxu0 0.0
    %435 = vmatprep.subr.mxu0 0.0
    %436 = vmatpush2.msra.mxu0 0.0
    %437 = vmatprep.subr.mxu0 0.0
    %438 = vmatpush2.msra.mxu0 0.0
    %439 = vmatprep.subr.mxu0 0.0
    %440 = vmatpush2.msra.mxu0 0.0
    %441 = vmatprep.subr.mxu0 0.0
    %442 = vmatpush2.msra.mxu0 0.0
    %443 = vmatprep.subr.mxu0 0.0
    %444 = vmatpush2.msra.mxu0 0.0
    %445 = vmatprep.subr.mxu0 0.0
    %446 = vmatpush2.msra.mxu0 0.0
    %447 = vmatprep.subr.mxu0 0.0
    %448 = vmatpush2.msra.mxu0 0.0
    %449 = vmatprep.subr.mxu0 0.0
    %450 = vmatpush2.msra.mxu0 0.0
    %451 = vmatprep.subr.mxu0 0.0
    %452 = vmatpush2.msra.mxu0 0.0
    %453 = vmatprep.subr.mxu0 0.0
    %454 = vmatpush2.msra.mxu0 0.0
    %455 = vmatprep.subr.mxu0 0.0
    %456 = vmatpush2.msra.mxu0 0.0
    %457 = vmatprep.subr.mxu0 0.0
    %458 = vmatpush2.msra.mxu0 0.0
    %459 = vmatprep.mubr.f32.mxu0 0.0
    %460 = vmatmul.mubr.f32.gmra.mxu0 %v393
    %v461 = vpop.f32.mrf.mxu0
    %v462 = vadd.f32 %v85, %v461
    %v463 = vpop.f32.mrf.mxu0
    %464 = vdwg.mxu0
    %465 = vmatprep.subr.mxu0 0.0
    %466 = vmatpush1.msra.mxu0 %v78
    %467 = vmatprep.subr.mxu0 0.0
    %468 = vmatpush1.msra.mxu0 %v77
    %469 = vmatprep.subr.mxu0 0.0
    %470 = vmatpush1.msra.mxu0 %v76
    %471 = vmatprep.subr.mxu0 0.0
    %472 = vmatpush1.msra.mxu0 %v75
    %473 = vmatprep.subr.mxu0 0.0
    %474 = vmatpush1.msra.mxu0 %v74
    %475 = vmatprep.subr.mxu0 0.0
    %476 = vmatpush1.msra.mxu0 %v73
    %477 = vmatprep.subr.mxu0 0.0
    %478 = vmatpush1.msra.mxu0 %v72
    %479 = vmatprep.subr.mxu0 0.0
    %480 = vmatpush1.msra.mxu0 %v71
    %481 = vmatprep.subr.mxu0 0.0
    %482 = vmatpush1.msra.mxu0 %v70
    %483 = vmatprep.subr.mxu0 0.0
    %484 = vmatpush1.msra.mxu0 %v69
    %485 = vmatprep.subr.mxu0 0.0
    %486 = vmatpush1.msra.mxu0 %v68
    %487 = vmatprep.subr.mxu0 0.0
    %488 = vmatpush1.msra.mxu0 %v67
    %489 = vmatprep.subr.mxu0 0.0
    %490 = vmatpush1.msra.mxu0 %v66
    %491 = vmatprep.subr.mxu0 0.0
    %492 = vmatpush1.msra.mxu0 %v65
    %493 = vmatprep.subr.mxu0 0.0
    %494 = vmatpush1.msra.mxu0 %v64
    %495 = vmatprep.subr.mxu0 0.0
    %496 = vmatpush1.msra.mxu0 %v63
    %497 = vmatprep.subr.mxu0 0.0
    %498 = vmatpush2.msra.mxu0 0.0
    %499 = vmatprep.subr.mxu0 0.0
    %500 = vmatpush2.msra.mxu0 0.0
    %501 = vmatprep.subr.mxu0 0.0
    %502 = vmatpush2.msra.mxu0 0.0
    %503 = vmatprep.subr.mxu0 0.0
    %504 = vmatpush2.msra.mxu0 0.0
    %505 = vmatprep.subr.mxu0 0.0
    %506 = vmatpush2.msra.mxu0 0.0
    %507 = vmatprep.subr.mxu0 0.0
    %508 = vmatpush2.msra.mxu0 0.0
    %509 = vmatprep.subr.mxu0 0.0
    %510 = vmatpush2.msra.mxu0 0.0
    %511 = vmatprep.subr.mxu0 0.0
    %512 = vmatpush2.msra.mxu0 0.0
    %513 = vmatprep.subr.mxu0 0.0
    %514 = vmatpush2.msra.mxu0 0.0
    %515 = vmatprep.subr.mxu0 0.0
    %516 = vmatpush2.msra.mxu0 0.0
    %517 = vmatprep.subr.mxu0 0.0
    %518 = vmatpush2.msra.mxu0 0.0
    %519 = vmatprep.subr.mxu0 0.0
    %520 = vmatpush2.msra.mxu0 0.0
    %521 = vmatprep.subr.mxu0 0.0
    %522 = vmatpush2.msra.mxu0 0.0
    %523 = vmatprep.subr.mxu0 0.0
    %524 = vmatpush2.msra.mxu0 0.0
    %525 = vmatprep.subr.mxu0 0.0
    %526 = vmatpush2.msra.mxu0 0.0
    %527 = vmatprep.subr.mxu0 0.0
    %528 = vmatpush2.msra.mxu0 0.0
    %529 = vmatprep.mubr.f32.mxu0 0.0
    %530 = vmatmul.mubr.f32.gmra.mxu0 %v387
    %v531 = vpop.f32.mrf.mxu0
    %v532 = vadd.f32 0.0, %v531
    %v533 = vpop.f32.mrf.mxu0
    %534 = vdwg.mxu0
    %v535 = vadd.f32 %v462, %v532
    %v536 = vmax.f32 %v535, 0.0
    %v537 = vmul.f32 %v387, 0.9
    %v538 = vmul.f32 %v536, 0.1
    %v539 = vadd.f32 %v537, %v538
    %s540 = scalar_lea.vmem [#allocation9], 16
    %541 = vst [vmem:[%s540] sm:$0xff] %v539
    %s542 = scalar_lea.vmem [#allocation3], 24
    %v543 = vld [vmem:[%s542] sm:$0xff]
    %v545 = vsel %vm88, %v543, 0
    %547 = vmatprep.subr.mxu0 0.0
    %548 = vmatpush1.msra.mxu0 0.0
    %549 = vmatprep.subr.mxu0 0.0
    %550 = vmatpush1.msra.mxu0 0.0
    %551 = vmatprep.subr.mxu0 0.0
    %552 = vmatpush1.msra.mxu0 0.0
    %553 = vmatprep.subr.mxu0 0.0
    %554 = vmatpush1.msra.mxu0 0.0
    %555 = vmatprep.subr.mxu0 0.0
    %556 = vmatpush1.msra.mxu0 0.0
    %557 = vmatprep.subr.mxu0 0.0
    %558 = vmatpush1.msra.mxu0 0.0
    %559 = vmatprep.subr.mxu0 0.0
    %560 = vmatpush1.msra.mxu0 0.0
    %561 = vmatprep.subr.mxu0 0.0
    %562 = vmatpush1.msra.mxu0 0.0
    %563 = vmatprep.subr.mxu0 0.0
    %564 = vmatpush1.msra.mxu0 0.0
    %565 = vmatprep.subr.mxu0 0.0
    %566 = vmatpush1.msra.mxu0 0.0
    %567 = vmatprep.subr.mxu0 0.0
    %568 = vmatpush1.msra.mxu0 0.0
    %569 = vmatprep.subr.mxu0 0.0
    %570 = vmatpush1.msra.mxu0 0.0
    %571 = vmatprep.subr.mxu0 0.0
    %572 = vmatpush1.msra.mxu0 0.0
    %573 = vmatprep.subr.mxu0 0.0
    %574 = vmatpush1.msra.mxu0 0.0
    %575 = vmatprep.subr.mxu0 0.0
    %576 = vmatpush1.msra.mxu0 0.0
    %577 = vmatprep.subr.mxu0 0.0
    %578 = vmatpush1.msra.mxu0 %v62
    %579 = vmatprep.subr.mxu0 0.0
    %580 = vmatpush2.msra.mxu0 0.0
    %581 = vmatprep.subr.mxu0 0.0
    %582 = vmatpush2.msra.mxu0 0.0
    %583 = vmatprep.subr.mxu0 0.0
    %584 = vmatpush2.msra.mxu0 0.0
    %585 = vmatprep.subr.mxu0 0.0
    %586 = vmatpush2.msra.mxu0 0.0
    %587 = vmatprep.subr.mxu0 0.0
    %588 = vmatpush2.msra.mxu0 0.0
    %589 = vmatprep.subr.mxu0 0.0
    %590 = vmatpush2.msra.mxu0 0.0
    %591 = vmatprep.subr.mxu0 0.0
    %592 = vmatpush2.msra.mxu0 0.0
    %593 = vmatprep.subr.mxu0 0.0
    %594 = vmatpush2.msra.mxu0 0.0
    %595 = vmatprep.subr.mxu0 0.0
    %596 = vmatpush2.msra.mxu0 0.0
    %597 = vmatprep.subr.mxu0 0.0
    %598 = vmatpush2.msra.mxu0 0.0
    %599 = vmatprep.subr.mxu0 0.0
    %600 = vmatpush2.msra.mxu0 0.0
    %601 = vmatprep.subr.mxu0 0.0
    %602 = vmatpush2.msra.mxu0 0.0
    %603 = vmatprep.subr.mxu0 0.0
    %604 = vmatpush2.msra.mxu0 0.0
    %605 = vmatprep.subr.mxu0 0.0
    %606 = vmatpush2.msra.mxu0 0.0
    %607 = vmatprep.subr.mxu0 0.0
    %608 = vmatpush2.msra.mxu0 0.0
    %609 = vmatprep.subr.mxu0 0.0
    %610 = vmatpush2.msra.mxu0 0.0
    %611 = vmatprep.mubr.f32.mxu0 0.0
    %612 = vmatmul.mubr.f32.gmra.mxu0 %v545
    %v613 = vpop.f32.mrf.mxu0
    %v614 = vadd.f32 %v85, %v613
    %v615 = vpop.f32.mrf.mxu0
    %616 = vdwg.mxu0
    %617 = vmatprep.subr.mxu0 0.0
    %618 = vmatpush1.msra.mxu0 %v78
    %619 = vmatprep.subr.mxu0 0.0
    %620 = vmatpush1.msra.mxu0 %v77
    %621 = vmatprep.subr.mxu0 0.0
    %622 = vmatpush1.msra.mxu0 %v76
    %623 = vmatprep.subr.mxu0 0.0
    %624 = vmatpush1.msra.mxu0 %v75
    %625 = vmatprep.subr.mxu0 0.0
    %626 = vmatpush1.msra.mxu0 %v74
    %627 = vmatprep.subr.mxu0 0.0
    %628 = vmatpush1.msra.mxu0 %v73
    %629 = vmatprep.subr.mxu0 0.0
    %630 = vmatpush1.msra.mxu0 %v72
    %631 = vmatprep.subr.mxu0 0.0
    %632 = vmatpush1.msra.mxu0 %v71
    %633 = vmatprep.subr.mxu0 0.0
    %634 = vmatpush1.msra.mxu0 %v70
    %635 = vmatprep.subr.mxu0 0.0
    %636 = vmatpush1.msra.mxu0 %v69
    %637 = vmatprep.subr.mxu0 0.0
    %638 = vmatpush1.msra.mxu0 %v68
    %639 = vmatprep.subr.mxu0 0.0
    %640 = vmatpush1.msra.mxu0 %v67
    %641 = vmatprep.subr.mxu0 0.0
    %642 = vmatpush1.msra.mxu0 %v66
    %643 = vmatprep.subr.mxu0 0.0
    %644 = vmatpush1.msra.mxu0 %v65
    %645 = vmatprep.subr.mxu0 0.0
    %646 = vmatpush1.msra.mxu0 %v64
    %647 = vmatprep.subr.mxu0 0.0
    %648 = vmatpush1.msra.mxu0 %v63
    %649 = vmatprep.subr.mxu0 0.0
    %650 = vmatpush2.msra.mxu0 0.0
    %651 = vmatprep.subr.mxu0 0.0
    %652 = vmatpush2.msra.mxu0 0.0
    %653 = vmatprep.subr.mxu0 0.0
    %654 = vmatpush2.msra.mxu0 0.0
    %655 = vmatprep.subr.mxu0 0.0
    %656 = vmatpush2.msra.mxu0 0.0
    %657 = vmatprep.subr.mxu0 0.0
    %658 = vmatpush2.msra.mxu0 0.0
    %659 = vmatprep.subr.mxu0 0.0
    %660 = vmatpush2.msra.mxu0 0.0
    %661 = vmatprep.subr.mxu0 0.0
    %662 = vmatpush2.msra.mxu0 0.0
    %663 = vmatprep.subr.mxu0 0.0
    %664 = vmatpush2.msra.mxu0 0.0
    %665 = vmatprep.subr.mxu0 0.0
    %666 = vmatpush2.msra.mxu0 0.0
    %667 = vmatprep.subr.mxu0 0.0
    %668 = vmatpush2.msra.mxu0 0.0
    %669 = vmatprep.subr.mxu0 0.0
    %670 = vmatpush2.msra.mxu0 0.0
    %671 = vmatprep.subr.mxu0 0.0
    %672 = vmatpush2.msra.mxu0 0.0
    %673 = vmatprep.subr.mxu0 0.0
    %674 = vmatpush2.msra.mxu0 0.0
    %675 = vmatprep.subr.mxu0 0.0
    %676 = vmatpush2.msra.mxu0 0.0
    %677 = vmatprep.subr.mxu0 0.0
    %678 = vmatpush2.msra.mxu0 0.0
    %679 = vmatprep.subr.mxu0 0.0
    %680 = vmatpush2.msra.mxu0 0.0
    %681 = vmatprep.mubr.f32.mxu0 0.0
    %682 = vmatmul.mubr.f32.gmra.mxu0 %v539
    %v683 = vpop.f32.mrf.mxu0
    %v684 = vadd.f32 0.0, %v683
    %v685 = vpop.f32.mrf.mxu0
    %686 = vdwg.mxu0
    %v687 = vadd.f32 %v614, %v684
    %v688 = vmax.f32 %v687, 0.0
    %v689 = vmul.f32 %v539, 0.9
    %v690 = vmul.f32 %v688, 0.1
    %v691 = vadd.f32 %v689, %v690
    %s692 = scalar_lea.vmem [#allocation9], 24
    %693 = vst [vmem:[%s692] sm:$0xff] %v691
    %s694 = scalar_lea.vmem [#allocation3], 32
    %v695 = vld [vmem:[%s694] sm:$0xff]
    %v697 = vsel %vm88, %v695, 0
    %699 = vmatprep.subr.mxu0 0.0
    %700 = vmatpush1.msra.mxu0 0.0
    %701 = vmatprep.subr.mxu0 0.0
    %702 = vmatpush1.msra.mxu0 0.0
    %703 = vmatprep.subr.mxu0 0.0
    %704 = vmatpush1.msra.mxu0 0.0
    %705 = vmatprep.subr.mxu0 0.0
    %706 = vmatpush1.msra.mxu0 0.0
    %707 = vmatprep.subr.mxu0 0.0
    %708 = vmatpush1.msra.mxu0 0.0
    %709 = vmatprep.subr.mxu0 0.0
    %710 = vmatpush1.msra.mxu0 0.0
    %711 = vmatprep.subr.mxu0 0.0
    %712 = vmatpush1.msra.mxu0 0.0
    %713 = vmatprep.subr.mxu0 0.0
    %714 = vmatpush1.msra.mxu0 0.0
    %715 = vmatprep.subr.mxu0 0.0
    %716 = vmatpush1.msra.mxu0 0.0
    %717 = vmatprep.subr.mxu0 0.0
    %718 = vmatpush1.msra.mxu0 0.0
    %719 = vmatprep.subr.mxu0 0.0
    %720 = vmatpush1.msra.mxu0 0.0
    %721 = vmatprep.subr.mxu0 0.0
    %722 = vmatpush1.msra.mxu0 0.0
    %723 = vmatprep.subr.mxu0 0.0
    %724 = vmatpush1.msra.mxu0 0.0
    %725 = vmatprep.subr.mxu0 0.0
    %726 = vmatpush1.msra.mxu0 0.0
    %727 = vmatprep.subr.mxu0 0.0
    %728 = vmatpush1.msra.mxu0 0.0
    %729 = vmatprep.subr.mxu0 0.0
    %730 = vmatpush1.msra.mxu0 %v62
    %731 = vmatprep.subr.mxu0 0.0
    %732 = vmatpush2.msra.mxu0 0.0
    %733 = vmatprep.subr.mxu0 0.0
    %734 = vmatpush2.msra.mxu0 0.0
    %735 = vmatprep.subr.mxu0 0.0
    %736 = vmatpush2.msra.mxu0 0.0
    %737 = vmatprep.subr.mxu0 0.0
    %738 = vmatpush2.msra.mxu0 0.0
    %739 = vmatprep.subr.mxu0 0.0
    %740 = vmatpush2.msra.mxu0 0.0
    %741 = vmatprep.subr.mxu0 0.0
    %742 = vmatpush2.msra.mxu0 0.0
    %743 = vmatprep.subr.mxu0 0.0
    %744 = vmatpush2.msra.mxu0 0.0
    %745 = vmatprep.subr.mxu0 0.0
    %746 = vmatpush2.msra.mxu0 0.0
    %747 = vmatprep.subr.mxu0 0.0
    %748 = vmatpush2.msra.mxu0 0.0
    %749 = vmatprep.subr.mxu0 0.0
    %750 = vmatpush2.msra.mxu0 0.0
    %751 = vmatprep.subr.mxu0 0.0
    %752 = vmatpush2.msra.mxu0 0.0
    %753 = vmatprep.subr.mxu0 0.0
    %754 = vmatpush2.msra.mxu0 0.0
    %755 = vmatprep.subr.mxu0 0.0
    %756 = vmatpush2.msra.mxu0 0.0
    %757 = vmatprep.subr.mxu0 0.0
    %758 = vmatpush2.msra.mxu0 0.0
    %759 = vmatprep.subr.mxu0 0.0
    %760 = vmatpush2.msra.mxu0 0.0
    %761 = vmatprep.subr.mxu0 0.0
    %762 = vmatpush2.msra.mxu0 0.0
    %763 = vmatprep.mubr.f32.mxu0 0.0
    %764 = vmatmul.mubr.f32.gmra.mxu0 %v697
    %v765 = vpop.f32.mrf.mxu0
    %v766 = vadd.f32 %v85, %v765
    %v767 = vpop.f32.mrf.mxu0
    %768 = vdwg.mxu0
    %769 = vmatprep.subr.mxu0 0.0
    %770 = vmatpush1.msra.mxu0 %v78
    %771 = vmatprep.subr.mxu0 0.0
    %772 = vmatpush1.msra.mxu0 %v77
    %773 = vmatprep.subr.mxu0 0.0
    %774 = vmatpush1.msra.mxu0 %v76
    %775 = vmatprep.subr.mxu0 0.0
    %776 = vmatpush1.msra.mxu0 %v75
    %777 = vmatprep.subr.mxu0 0.0
    %778 = vmatpush1.msra.mxu0 %v74
    %779 = vmatprep.subr.mxu0 0.0
    %780 = vmatpush1.msra.mxu0 %v73
    %781 = vmatprep.subr.mxu0 0.0
    %782 = vmatpush1.msra.mxu0 %v72
    %783 = vmatprep.subr.mxu0 0.0
    %784 = vmatpush1.msra.mxu0 %v71
    %785 = vmatprep.subr.mxu0 0.0
    %786 = vmatpush1.msra.mxu0 %v70
    %787 = vmatprep.subr.mxu0 0.0
    %788 = vmatpush1.msra.mxu0 %v69
    %789 = vmatprep.subr.mxu0 0.0
    %790 = vmatpush1.msra.mxu0 %v68
    %791 = vmatprep.subr.mxu0 0.0
    %792 = vmatpush1.msra.mxu0 %v67
    %793 = vmatprep.subr.mxu0 0.0
    %794 = vmatpush1.msra.mxu0 %v66
    %795 = vmatprep.subr.mxu0 0.0
    %796 = vmatpush1.msra.mxu0 %v65
    %797 = vmatprep.subr.mxu0 0.0
    %798 = vmatpush1.msra.mxu0 %v64
    %799 = vmatprep.subr.mxu0 0.0
    %800 = vmatpush1.msra.mxu0 %v63
    %801 = vmatprep.subr.mxu0 0.0
    %802 = vmatpush2.msra.mxu0 0.0
    %803 = vmatprep.subr.mxu0 0.0
    %804 = vmatpush2.msra.mxu0 0.0
    %805 = vmatprep.subr.mxu0 0.0
    %806 = vmatpush2.msra.mxu0 0.0
    %807 = vmatprep.subr.mxu0 0.0
    %808 = vmatpush2.msra.mxu0 0.0
    %809 = vmatprep.subr.mxu0 0.0
    %810 = vmatpush2.msra.mxu0 0.0
    %811 = vmatprep.subr.mxu0 0.0
    %812 = vmatpush2.msra.mxu0 0.0
    %813 = vmatprep.subr.mxu0 0.0
    %814 = vmatpush2.msra.mxu0 0.0
    %815 = vmatprep.subr.mxu0 0.0
    %816 = vmatpush2.msra.mxu0 0.0
    %817 = vmatprep.subr.mxu0 0.0
    %818 = vmatpush2.msra.mxu0 0.0
    %819 = vmatprep.subr.mxu0 0.0
    %820 = vmatpush2.msra.mxu0 0.0
    %821 = vmatprep.subr.mxu0 0.0
    %822 = vmatpush2.msra.mxu0 0.0
    %823 = vmatprep.subr.mxu0 0.0
    %824 = vmatpush2.msra.mxu0 0.0
    %825 = vmatprep.subr.mxu0 0.0
    %826 = vmatpush2.msra.mxu0 0.0
    %827 = vmatprep.subr.mxu0 0.0
    %828 = vmatpush2.msra.mxu0 0.0
    %829 = vmatprep.subr.mxu0 0.0
    %830 = vmatpush2.msra.mxu0 0.0
    %831 = vmatprep.subr.mxu0 0.0
    %832 = vmatpush2.msra.mxu0 0.0
    %833 = vmatprep.mubr.f32.mxu0 0.0
    %834 = vmatmul.mubr.f32.gmra.mxu0 %v691
    %v835 = vpop.f32.mrf.mxu0
    %v836 = vadd.f32 0.0, %v835
    %v837 = vpop.f32.mrf.mxu0
    %838 = vdwg.mxu0
    %v839 = vadd.f32 %v766, %v836
    %v840 = vmax.f32 %v839, 0.0
    %v841 = vmul.f32 %v691, 0.9
    %v842 = vmul.f32 %v840, 0.1
    %v843 = vadd.f32 %v841, %v842
    %s844 = scalar_lea.vmem [#allocation9], 32
    %845 = vst [vmem:[%s844] sm:$0xff] %v843
    %s846 = scalar_lea.vmem [#allocation3], 40
    %v847 = vld [vmem:[%s846] sm:$0xff]
    %v849 = vsel %vm88, %v847, 0
    %851 = vmatprep.subr.mxu0 0.0
    %852 = vmatpush1.msra.mxu0 0.0
    %853 = vmatprep.subr.mxu0 0.0
    %854 = vmatpush1.msra.mxu0 0.0
    %855 = vmatprep.subr.mxu0 0.0
    %856 = vmatpush1.msra.mxu0 0.0
    %857 = vmatprep.subr.mxu0 0.0
    %858 = vmatpush1.msra.mxu0 0.0
    %859 = vmatprep.subr.mxu0 0.0
    %860 = vmatpush1.msra.mxu0 0.0
    %861 = vmatprep.subr.mxu0 0.0
    %862 = vmatpush1.msra.mxu0 0.0
    %863 = vmatprep.subr.mxu0 0.0
    %864 = vmatpush1.msra.mxu0 0.0
    %865 = vmatprep.subr.mxu0 0.0
    %866 = vmatpush1.msra.mxu0 0.0
    %867 = vmatprep.subr.mxu0 0.0
    %868 = vmatpush1.msra.mxu0 0.0
    %869 = vmatprep.subr.mxu0 0.0
    %870 = vmatpush1.msra.mxu0 0.0
    %871 = vmatprep.subr.mxu0 0.0
    %872 = vmatpush1.msra.mxu0 0.0
    %873 = vmatprep.subr.mxu0 0.0
    %874 = vmatpush1.msra.mxu0 0.0
    %875 = vmatprep.subr.mxu0 0.0
    %876 = vmatpush1.msra.mxu0 0.0
    %877 = vmatprep.subr.mxu0 0.0
    %878 = vmatpush1.msra.mxu0 0.0
    %879 = vmatprep.subr.mxu0 0.0
    %880 = vmatpush1.msra.mxu0 0.0
    %881 = vmatprep.subr.mxu0 0.0
    %882 = vmatpush1.msra.mxu0 %v62
    %883 = vmatprep.subr.mxu0 0.0
    %884 = vmatpush2.msra.mxu0 0.0
    %885 = vmatprep.subr.mxu0 0.0
    %886 = vmatpush2.msra.mxu0 0.0
    %887 = vmatprep.subr.mxu0 0.0
    %888 = vmatpush2.msra.mxu0 0.0
    %889 = vmatprep.subr.mxu0 0.0
    %890 = vmatpush2.msra.mxu0 0.0
    %891 = vmatprep.subr.mxu0 0.0
    %892 = vmatpush2.msra.mxu0 0.0
    %893 = vmatprep.subr.mxu0 0.0
    %894 = vmatpush2.msra.mxu0 0.0
    %895 = vmatprep.subr.mxu0 0.0
    %896 = vmatpush2.msra.mxu0 0.0
    %897 = vmatprep.subr.mxu0 0.0
    %898 = vmatpush2.msra.mxu0 0.0
    %899 = vmatprep.subr.mxu0 0.0
    %900 = vmatpush2.msra.mxu0 0.0
    %901 = vmatprep.subr.mxu0 0.0
    %902 = vmatpush2.msra.mxu0 0.0
    %903 = vmatprep.subr.mxu0 0.0
    %904 = vmatpush2.msra.mxu0 0.0
    %905 = vmatprep.subr.mxu0 0.0
    %906 = vmatpush2.msra.mxu0 0.0
    %907 = vmatprep.subr.mxu0 0.0
    %908 = vmatpush2.msra.mxu0 0.0
    %909 = vmatprep.subr.mxu0 0.0
    %910 = vmatpush2.msra.mxu0 0.0
    %911 = vmatprep.subr.mxu0 0.0
    %912 = vmatpush2.msra.mxu0 0.0
    %913 = vmatprep.subr.mxu0 0.0
    %914 = vmatpush2.msra.mxu0 0.0
    %915 = vmatprep.mubr.f32.mxu0 0.0
    %916 = vmatmul.mubr.f32.gmra.mxu0 %v849
    %v917 = vpop.f32.mrf.mxu0
    %v918 = vadd.f32 %v85, %v917
    %v919 = vpop.f32.mrf.mxu0
    %920 = vdwg.mxu0
    %921 = vmatprep.subr.mxu0 0.0
    %922 = vmatpush1.msra.mxu0 %v78
    %923 = vmatprep.subr.mxu0 0.0
    %924 = vmatpush1.msra.mxu0 %v77
    %925 = vmatprep.subr.mxu0 0.0
    %926 = vmatpush1.msra.mxu0 %v76
    %927 = vmatprep.subr.mxu0 0.0
    %928 = vmatpush1.msra.mxu0 %v75
    %929 = vmatprep.subr.mxu0 0.0
    %930 = vmatpush1.msra.mxu0 %v74
    %931 = vmatprep.subr.mxu0 0.0
    %932 = vmatpush1.msra.mxu0 %v73
    %933 = vmatprep.subr.mxu0 0.0
    %934 = vmatpush1.msra.mxu0 %v72
    %935 = vmatprep.subr.mxu0 0.0
    %936 = vmatpush1.msra.mxu0 %v71
    %937 = vmatprep.subr.mxu0 0.0
    %938 = vmatpush1.msra.mxu0 %v70
    %939 = vmatprep.subr.mxu0 0.0
    %940 = vmatpush1.msra.mxu0 %v69
    %941 = vmatprep.subr.mxu0 0.0
    %942 = vmatpush1.msra.mxu0 %v68
    %943 = vmatprep.subr.mxu0 0.0
    %944 = vmatpush1.msra.mxu0 %v67
    %945 = vmatprep.subr.mxu0 0.0
    %946 = vmatpush1.msra.mxu0 %v66
    %947 = vmatprep.subr.mxu0 0.0
    %948 = vmatpush1.msra.mxu0 %v65
    %949 = vmatprep.subr.mxu0 0.0
    %950 = vmatpush1.msra.mxu0 %v64
    %951 = vmatprep.subr.mxu0 0.0
    %952 = vmatpush1.msra.mxu0 %v63
    %953 = vmatprep.subr.mxu0 0.0
    %954 = vmatpush2.msra.mxu0 0.0
    %955 = vmatprep.subr.mxu0 0.0
    %956 = vmatpush2.msra.mxu0 0.0
    %957 = vmatprep.subr.mxu0 0.0
    %958 = vmatpush2.msra.mxu0 0.0
    %959 = vmatprep.subr.mxu0 0.0
    %960 = vmatpush2.msra.mxu0 0.0
    %961 = vmatprep.subr.mxu0 0.0
    %962 = vmatpush2.msra.mxu0 0.0
    %963 = vmatprep.subr.mxu0 0.0
    %964 = vmatpush2.msra.mxu0 0.0
    %965 = vmatprep.subr.mxu0 0.0
    %966 = vmatpush2.msra.mxu0 0.0
    %967 = vmatprep.subr.mxu0 0.0
    %968 = vmatpush2.msra.mxu0 0.0
    %969 = vmatprep.subr.mxu0 0.0
    %970 = vmatpush2.msra.mxu0 0.0
    %971 = vmatprep.subr.mxu0 0.0
    %972 = vmatpush2.msra.mxu0 0.0
    %973 = vmatprep.subr.mxu0 0.0
    %974 = vmatpush2.msra.mxu0 0.0
    %975 = vmatprep.subr.mxu0 0.0
    %976 = vmatpush2.msra.mxu0 0.0
    %977 = vmatprep.subr.mxu0 0.0
    %978 = vmatpush2.msra.mxu0 0.0
    %979 = vmatprep.subr.mxu0 0.0
    %980 = vmatpush2.msra.mxu0 0.0
    %981 = vmatprep.subr.mxu0 0.0
    %982 = vmatpush2.msra.mxu0 0.0
    %983 = vmatprep.subr.mxu0 0.0
    %984 = vmatpush2.msra.mxu0 0.0
    %985 = vmatprep.mubr.f32.mxu0 0.0
    %986 = vmatmul.mubr.f32.gmra.mxu0 %v843
    %v987 = vpop.f32.mrf.mxu0
    %v988 = vadd.f32 0.0, %v987
    %v989 = vpop.f32.mrf.mxu0
    %990 = vdwg.mxu0
    %v991 = vadd.f32 %v918, %v988
    %v992 = vmax.f32 %v991, 0.0
    %v993 = vmul.f32 %v843, 0.9
    %v994 = vmul.f32 %v992, 0.1
    %v995 = vadd.f32 %v993, %v994
    %s996 = scalar_lea.vmem [#allocation9], 40
    %997 = vst [vmem:[%s996] sm:$0xff] %v995
    %s998 = scalar_lea.vmem [#allocation3], 48
    %v999 = vld [vmem:[%s998] sm:$0xff]
    %v1001 = vsel %vm88, %v999, 0
    %1003 = vmatprep.subr.mxu0 0.0
    %1004 = vmatpush1.msra.mxu0 0.0
    %1005 = vmatprep.subr.mxu0 0.0
    %1006 = vmatpush1.msra.mxu0 0.0
    %1007 = vmatprep.subr.mxu0 0.0
    %1008 = vmatpush1.msra.mxu0 0.0
    %1009 = vmatprep.subr.mxu0 0.0
    %1010 = vmatpush1.msra.mxu0 0.0
    %1011 = vmatprep.subr.mxu0 0.0
    %1012 = vmatpush1.msra.mxu0 0.0
    %1013 = vmatprep.subr.mxu0 0.0
    %1014 = vmatpush1.msra.mxu0 0.0
    %1015 = vmatprep.subr.mxu0 0.0
    %1016 = vmatpush1.msra.mxu0 0.0
    %1017 = vmatprep.subr.mxu0 0.0
    %1018 = vmatpush1.msra.mxu0 0.0
    %1019 = vmatprep.subr.mxu0 0.0
    %1020 = vmatpush1.msra.mxu0 0.0
    %1021 = vmatprep.subr.mxu0 0.0
    %1022 = vmatpush1.msra.mxu0 0.0
    %1023 = vmatprep.subr.mxu0 0.0
    %1024 = vmatpush1.msra.mxu0 0.0
    %1025 = vmatprep.subr.mxu0 0.0
    %1026 = vmatpush1.msra.mxu0 0.0
    %1027 = vmatprep.subr.mxu0 0.0
    %1028 = vmatpush1.msra.mxu0 0.0
    %1029 = vmatprep.subr.mxu0 0.0
    %1030 = vmatpush1.msra.mxu0 0.0
    %1031 = vmatprep.subr.mxu0 0.0
    %1032 = vmatpush1.msra.mxu0 0.0
    %1033 = vmatprep.subr.mxu0 0.0
    %1034 = vmatpush1.msra.mxu0 %v62
    %1035 = vmatprep.subr.mxu0 0.0
    %1036 = vmatpush2.msra.mxu0 0.0
    %1037 = vmatprep.subr.mxu0 0.0
    %1038 = vmatpush2.msra.mxu0 0.0
    %1039 = vmatprep.subr.mxu0 0.0
    %1040 = vmatpush2.msra.mxu0 0.0
    %1041 = vmatprep.subr.mxu0 0.0
    %1042 = vmatpush2.msra.mxu0 0.0
    %1043 = vmatprep.subr.mxu0 0.0
    %1044 = vmatpush2.msra.mxu0 0.0
    %1045 = vmatprep.subr.mxu0 0.0
    %1046 = vmatpush2.msra.mxu0 0.0
    %1047 = vmatprep.subr.mxu0 0.0
    %1048 = vmatpush2.msra.mxu0 0.0
    %1049 = vmatprep.subr.mxu0 0.0
    %1050 = vmatpush2.msra.mxu0 0.0
    %1051 = vmatprep.subr.mxu0 0.0
    %1052 = vmatpush2.msra.mxu0 0.0
    %1053 = vmatprep.subr.mxu0 0.0
    %1054 = vmatpush2.msra.mxu0 0.0
    %1055 = vmatprep.subr.mxu0 0.0
    %1056 = vmatpush2.msra.mxu0 0.0
    %1057 = vmatprep.subr.mxu0 0.0
    %1058 = vmatpush2.msra.mxu0 0.0
    %1059 = vmatprep.subr.mxu0 0.0
    %1060 = vmatpush2.msra.mxu0 0.0
    %1061 = vmatprep.subr.mxu0 0.0
    %1062 = vmatpush2.msra.mxu0 0.0
    %1063 = vmatprep.subr.mxu0 0.0
    %1064 = vmatpush2.msra.mxu0 0.0
    %1065 = vmatprep.subr.mxu0 0.0
    %1066 = vmatpush2.msra.mxu0 0.0
    %1067 = vmatprep.mubr.f32.mxu0 0.0
    %1068 = vmatmul.mubr.f32.gmra.mxu0 %v1001
    %v1069 = vpop.f32.mrf.mxu0
    %v1070 = vadd.f32 %v85, %v1069
    %v1071 = vpop.f32.mrf.mxu0
    %1072 = vdwg.mxu0
    %1073 = vmatprep.subr.mxu0 0.0
    %1074 = vmatpush1.msra.mxu0 %v78
    %1075 = vmatprep.subr.mxu0 0.0
    %1076 = vmatpush1.msra.mxu0 %v77
    %1077 = vmatprep.subr.mxu0 0.0
    %1078 = vmatpush1.msra.mxu0 %v76
    %1079 = vmatprep.subr.mxu0 0.0
    %1080 = vmatpush1.msra.mxu0 %v75
    %1081 = vmatprep.subr.mxu0 0.0
    %1082 = vmatpush1.msra.mxu0 %v74
    %1083 = vmatprep.subr.mxu0 0.0
    %1084 = vmatpush1.msra.mxu0 %v73
    %1085 = vmatprep.subr.mxu0 0.0
    %1086 = vmatpush1.msra.mxu0 %v72
    %1087 = vmatprep.subr.mxu0 0.0
    %1088 = vmatpush1.msra.mxu0 %v71
    %1089 = vmatprep.subr.mxu0 0.0
    %1090 = vmatpush1.msra.mxu0 %v70
    %1091 = vmatprep.subr.mxu0 0.0
    %1092 = vmatpush1.msra.mxu0 %v69
    %1093 = vmatprep.subr.mxu0 0.0
    %1094 = vmatpush1.msra.mxu0 %v68
    %1095 = vmatprep.subr.mxu0 0.0
    %1096 = vmatpush1.msra.mxu0 %v67
    %1097 = vmatprep.subr.mxu0 0.0
    %1098 = vmatpush1.msra.mxu0 %v66
    %1099 = vmatprep.subr.mxu0 0.0
    %1100 = vmatpush1.msra.mxu0 %v65
    %1101 = vmatprep.subr.mxu0 0.0
    %1102 = vmatpush1.msra.mxu0 %v64
    %1103 = vmatprep.subr.mxu0 0.0
    %1104 = vmatpush1.msra.mxu0 %v63
    %1105 = vmatprep.subr.mxu0 0.0
    %1106 = vmatpush2.msra.mxu0 0.0
    %1107 = vmatprep.subr.mxu0 0.0
    %1108 = vmatpush2.msra.mxu0 0.0
    %1109 = vmatprep.subr.mxu0 0.0
    %1110 = vmatpush2.msra.mxu0 0.0
    %1111 = vmatprep.subr.mxu0 0.0
    %1112 = vmatpush2.msra.mxu0 0.0
    %1113 = vmatprep.subr.mxu0 0.0
    %1114 = vmatpush2.msra.mxu0 0.0
    %1115 = vmatprep.subr.mxu0 0.0
    %1116 = vmatpush2.msra.mxu0 0.0
    %1117 = vmatprep.subr.mxu0 0.0
    %1118 = vmatpush2.msra.mxu0 0.0
    %1119 = vmatprep.subr.mxu0 0.0
    %1120 = vmatpush2.msra.mxu0 0.0
    %1121 = vmatprep.subr.mxu0 0.0
    %1122 = vmatpush2.msra.mxu0 0.0
    %1123 = vmatprep.subr.mxu0 0.0
    %1124 = vmatpush2.msra.mxu0 0.0
    %1125 = vmatprep.subr.mxu0 0.0
    %1126 = vmatpush2.msra.mxu0 0.0
    %1127 = vmatprep.subr.mxu0 0.0
    %1128 = vmatpush2.msra.mxu0 0.0
    %1129 = vmatprep.subr.mxu0 0.0
    %1130 = vmatpush2.msra.mxu0 0.0
    %1131 = vmatprep.subr.mxu0 0.0
    %1132 = vmatpush2.msra.mxu0 0.0
    %1133 = vmatprep.subr.mxu0 0.0
    %1134 = vmatpush2.msra.mxu0 0.0
    %1135 = vmatprep.subr.mxu0 0.0
    %1136 = vmatpush2.msra.mxu0 0.0
    %1137 = vmatprep.mubr.f32.mxu0 0.0
    %1138 = vmatmul.mubr.f32.gmra.mxu0 %v995
    %v1139 = vpop.f32.mrf.mxu0
    %v1140 = vadd.f32 0.0, %v1139
    %v1141 = vpop.f32.mrf.mxu0
    %1142 = vdwg.mxu0
    %v1143 = vadd.f32 %v1070, %v1140
    %v1144 = vmax.f32 %v1143, 0.0
    %v1145 = vmul.f32 %v995, 0.9
    %v1146 = vmul.f32 %v1144, 0.1
    %v1147 = vadd.f32 %v1145, %v1146
    %s1148 = scalar_lea.vmem [#allocation9], 48
    %1149 = vst [vmem:[%s1148] sm:$0xff] %v1147
    %s1150 = scalar_lea.vmem [#allocation3], 56
    %v1151 = vld [vmem:[%s1150] sm:$0xff]
    %v1153 = vsel %vm88, %v1151, 0
    %1155 = vmatprep.subr.mxu0 0.0
    %1156 = vmatpush1.msra.mxu0 0.0
    %1157 = vmatprep.subr.mxu0 0.0
    %1158 = vmatpush1.msra.mxu0 0.0
    %1159 = vmatprep.subr.mxu0 0.0
    %1160 = vmatpush1.msra.mxu0 0.0
    %1161 = vmatprep.subr.mxu0 0.0
    %1162 = vmatpush1.msra.mxu0 0.0
    %1163 = vmatprep.subr.mxu0 0.0
    %1164 = vmatpush1.msra.mxu0 0.0
    %1165 = vmatprep.subr.mxu0 0.0
    %1166 = vmatpush1.msra.mxu0 0.0
    %1167 = vmatprep.subr.mxu0 0.0
    %1168 = vmatpush1.msra.mxu0 0.0
    %1169 = vmatprep.subr.mxu0 0.0
    %1170 = vmatpush1.msra.mxu0 0.0
    %1171 = vmatprep.subr.mxu0 0.0
    %1172 = vmatpush1.msra.mxu0 0.0
    %1173 = vmatprep.subr.mxu0 0.0
    %1174 = vmatpush1.msra.mxu0 0.0
    %1175 = vmatprep.subr.mxu0 0.0
    %1176 = vmatpush1.msra.mxu0 0.0
    %1177 = vmatprep.subr.mxu0 0.0
    %1178 = vmatpush1.msra.mxu0 0.0
    %1179 = vmatprep.subr.mxu0 0.0
    %1180 = vmatpush1.msra.mxu0 0.0
    %1181 = vmatprep.subr.mxu0 0.0
    %1182 = vmatpush1.msra.mxu0 0.0
    %1183 = vmatprep.subr.mxu0 0.0
    %1184 = vmatpush1.msra.mxu0 0.0
    %1185 = vmatprep.subr.mxu0 0.0
    %1186 = vmatpush1.msra.mxu0 %v62
    %1187 = vmatprep.subr.mxu0 0.0
    %1188 = vmatpush2.msra.mxu0 0.0
    %1189 = vmatprep.subr.mxu0 0.0
    %1190 = vmatpush2.msra.mxu0 0.0
    %1191 = vmatprep.subr.mxu0 0.0
    %1192 = vmatpush2.msra.mxu0 0.0
    %1193 = vmatprep.subr.mxu0 0.0
    %1194 = vmatpush2.msra.mxu0 0.0
    %1195 = vmatprep.subr.mxu0 0.0
    %1196 = vmatpush2.msra.mxu0 0.0
    %1197 = vmatprep.subr.mxu0 0.0
    %1198 = vmatpush2.msra.mxu0 0.0
    %1199 = vmatprep.subr.mxu0 0.0
    %1200 = vmatpush2.msra.mxu0 0.0
    %1201 = vmatprep.subr.mxu0 0.0
    %1202 = vmatpush2.msra.mxu0 0.0
    %1203 = vmatprep.subr.mxu0 0.0
    %1204 = vmatpush2.msra.mxu0 0.0
    %1205 = vmatprep.subr.mxu0 0.0
    %1206 = vmatpush2.msra.mxu0 0.0
    %1207 = vmatprep.subr.mxu0 0.0
    %1208 = vmatpush2.msra.mxu0 0.0
    %1209 = vmatprep.subr.mxu0 0.0
    %1210 = vmatpush2.msra.mxu0 0.0
    %1211 = vmatprep.subr.mxu0 0.0
    %1212 = vmatpush2.msra.mxu0 0.0
    %1213 = vmatprep.subr.mxu0 0.0
    %1214 = vmatpush2.msra.mxu0 0.0
    %1215 = vmatprep.subr.mxu0 0.0
    %1216 = vmatpush2.msra.mxu0 0.0
    %1217 = vmatprep.subr.mxu0 0.0
    %1218 = vmatpush2.msra.mxu0 0.0
    %1219 = vmatprep.mubr.f32.mxu0 0.0
    %1220 = vmatmul.mubr.f32.gmra.mxu0 %v1153
    %v1221 = vpop.f32.mrf.mxu0
    %v1222 = vadd.f32 %v85, %v1221
    %v1223 = vpop.f32.mrf.mxu0
    %1224 = vdwg.mxu0
    %1225 = vmatprep.subr.mxu0 0.0
    %1226 = vmatpush1.msra.mxu0 %v78
    %1227 = vmatprep.subr.mxu0 0.0
    %1228 = vmatpush1.msra.mxu0 %v77
    %1229 = vmatprep.subr.mxu0 0.0
    %1230 = vmatpush1.msra.mxu0 %v76
    %1231 = vmatprep.subr.mxu0 0.0
    %1232 = vmatpush1.msra.mxu0 %v75
    %1233 = vmatprep.subr.mxu0 0.0
    %1234 = vmatpush1.msra.mxu0 %v74
    %1235 = vmatprep.subr.mxu0 0.0
    %1236 = vmatpush1.msra.mxu0 %v73
    %1237 = vmatprep.subr.mxu0 0.0
    %1238 = vmatpush1.msra.mxu0 %v72
    %1239 = vmatprep.subr.mxu0 0.0
    %1240 = vmatpush1.msra.mxu0 %v71
    %1241 = vmatprep.subr.mxu0 0.0
    %1242 = vmatpush1.msra.mxu0 %v70
    %1243 = vmatprep.subr.mxu0 0.0
    %1244 = vmatpush1.msra.mxu0 %v69
    %1245 = vmatprep.subr.mxu0 0.0
    %1246 = vmatpush1.msra.mxu0 %v68
    %1247 = vmatprep.subr.mxu0 0.0
    %1248 = vmatpush1.msra.mxu0 %v67
    %1249 = vmatprep.subr.mxu0 0.0
    %1250 = vmatpush1.msra.mxu0 %v66
    %1251 = vmatprep.subr.mxu0 0.0
    %1252 = vmatpush1.msra.mxu0 %v65
    %1253 = vmatprep.subr.mxu0 0.0
    %1254 = vmatpush1.msra.mxu0 %v64
    %1255 = vmatprep.subr.mxu0 0.0
    %1256 = vmatpush1.msra.mxu0 %v63
    %1257 = vmatprep.subr.mxu0 0.0
    %1258 = vmatpush2.msra.mxu0 0.0
    %1259 = vmatprep.subr.mxu0 0.0
    %1260 = vmatpush2.msra.mxu0 0.0
    %1261 = vmatprep.subr.mxu0 0.0
    %1262 = vmatpush2.msra.mxu0 0.0
    %1263 = vmatprep.subr.mxu0 0.0
    %1264 = vmatpush2.msra.mxu0 0.0
    %1265 = vmatprep.subr.mxu0 0.0
    %1266 = vmatpush2.msra.mxu0 0.0
    %1267 = vmatprep.subr.mxu0 0.0
    %1268 = vmatpush2.msra.mxu0 0.0
    %1269 = vmatprep.subr.mxu0 0.0
    %1270 = vmatpush2.msra.mxu0 0.0
    %1271 = vmatprep.subr.mxu0 0.0
    %1272 = vmatpush2.msra.mxu0 0.0
    %1273 = vmatprep.subr.mxu0 0.0
    %1274 = vmatpush2.msra.mxu0 0.0
    %1275 = vmatprep.subr.mxu0 0.0
    %1276 = vmatpush2.msra.mxu0 0.0
    %1277 = vmatprep.subr.mxu0 0.0
    %1278 = vmatpush2.msra.mxu0 0.0
    %1279 = vmatprep.subr.mxu0 0.0
    %1280 = vmatpush2.msra.mxu0 0.0
    %1281 = vmatprep.subr.mxu0 0.0
    %1282 = vmatpush2.msra.mxu0 0.0
    %1283 = vmatprep.subr.mxu0 0.0
    %1284 = vmatpush2.msra.mxu0 0.0
    %1285 = vmatprep.subr.mxu0 0.0
    %1286 = vmatpush2.msra.mxu0 0.0
    %1287 = vmatprep.subr.mxu0 0.0
    %1288 = vmatpush2.msra.mxu0 0.0
    %1289 = vmatprep.mubr.f32.mxu0 0.0
    %1290 = vmatmul.mubr.f32.gmra.mxu0 %v1147
    %v1291 = vpop.f32.mrf.mxu0
    %v1292 = vadd.f32 0.0, %v1291
    %v1293 = vpop.f32.mrf.mxu0
    %1294 = vdwg.mxu0
    %v1295 = vadd.f32 %v1222, %v1292
    %v1296 = vmax.f32 %v1295, 0.0
    %v1297 = vmul.f32 %v1147, 0.9
    %v1298 = vmul.f32 %v1296, 0.1
    %v1299 = vadd.f32 %v1297, %v1298
    %s1300 = scalar_lea.vmem [#allocation9], 56
    %1301 = vst [vmem:[%s1300] sm:$0xff] %v1299
    %1302 = vst [vmem:[#allocation2] sm:$0xff] %v1299
    // Predicated region
    $region34: #{tpu_custom_call.1} parent=1 // pred_check
      _
    $region35: #{tpu_custom_call.1} parent=1 // pred_check_branch
      %1304 = sbr.rel (0) target = $region37
    $region36: #{tpu_custom_call.1} parent=1 // pred_region
      %s1306 = ssub.s32 1024, 1024
      %1307 = vsyncadd [#allocation5], %s1306
      %s1308 = sshll.u32 [#allocation9], 4
      %s1309 = int_to_ptr.vmem [resolvable:$true] %s1308
      %1314 = dma.vmem_to_hbm [thread:$0]  %s1309, 1024, %s4, [#allocation5], 128, 128, 8
    $region37: #{tpu_custom_call.1} parent=1 // pred_fallthru
      _
    // Predicated region
    $region38: #{tpu_custom_call.1} parent=1 // pred_check
      _
    $region39: #{tpu_custom_call.1} parent=1 // pred_check_branch
      %1316 = sbr.rel (0) target = $region41
    $region40: #{tpu_custom_call.1} parent=1 // pred_region
      %1317 = dma.done [#allocation5], 1024
    $region41: #{tpu_custom_call.1} parent=1 // pred_fallthru
      _
    %1318 = vsyncpa [#allocation4], 1
    %1319 = vsyncpa [#allocation7], 1
    %1320 = vsyncpa [#allocation5], 1

</llo_original>
